<compile_context>
chip_gen: v6e
topology: v6e:2x2x1
jax: 0.10.0
libtpu: 0.0.40
codegen_flags: <defaults>
</compile_context>

<pallas_src>
import functools

import jax
import jax.numpy as jnp
from jax import lax
from jax.experimental import pallas as pl
from jax.experimental.pallas import tpu as pltpu

# stay well inside v7x's 64 MiB physical VMEM per TensorCore (128 MiB on v5e/v6e)
VMEM_LIMIT = 48 * 1024 * 1024


def _round_up(x, m):
    return ((x + m - 1) // m) * m


def _softplus(x):
    # numerically stable softplus (matches torch.nn.Softplus, beta=1)
    return jnp.maximum(x, 0.0) + jnp.log1p(jnp.exp(-jnp.abs(x)))


# ----------------------------- generic linear kernel --------------------------------

def _linear_kernel(x_ref, w_ref, b_ref, o_ref, *, activation):
    y = jnp.dot(x_ref[...], w_ref[...], preferred_element_type=jnp.float32) + b_ref[...]
    if activation == "softplus":
        y = _softplus(y)
    o_ref[...] = y


def pallas_linear(x, w, b, activation="none", row_tile=256):
    """out = act(x @ w + b); bf16 MXU inputs, f32 accumulate/output, row-tiled grid."""
    M, K = x.shape
    N = w.shape[1]
    tm = min(row_tile, _round_up(M, 8))
    m_pad = _round_up(M, tm)
    if m_pad != M:
        x = jnp.pad(x, ((0, m_pad - M), (0, 0)))
    cost = pl.CostEstimate(
        flops=int(2 * m_pad * K * N),
        transcendentals=int(m_pad * N if activation == "softplus" else 0),
        bytes_accessed=int(m_pad * K * 2 + K * N * 2 + m_pad * N * 4))
    out = pl.pallas_call(
        functools.partial(_linear_kernel, activation=activation),
        out_shape=jax.ShapeDtypeStruct((m_pad, N), jnp.float32),
        grid=(m_pad // tm,),
        in_specs=[
            pl.BlockSpec((tm, K), lambda i: (i, 0)),
            pl.BlockSpec((K, N), lambda i: (0, 0)),
            pl.BlockSpec((1, N), lambda i: (0, 0)),
        ],
        out_specs=pl.BlockSpec((tm, N), lambda i: (i, 0)),
        compiler_params=pltpu.CompilerParams(
            dimension_semantics=("parallel",), vmem_limit_bytes=VMEM_LIMIT),
        cost_estimate=cost,
    )(x.astype(jnp.bfloat16), w.astype(jnp.bfloat16),
      b.reshape(1, N).astype(jnp.float32))
    return out[:M] if m_pad != M else out


# ----------------------------- Gaussian smearing -------------------------------------

def _gaussian_kernel(d_ref, off_ref, o_ref, *, coeff):
    d = d_ref[...]          # [te, 1]
    off = off_ref[...]      # [1, Gp]
    o_ref[...] = jnp.exp(coeff * (d - off) ** 2).astype(o_ref.dtype)


def pallas_gaussian_smearing(d_pad, offsets_pad, coeff, edge_tile):
    e_pad = d_pad.shape[0]
    gp = offsets_pad.shape[0]
    return pl.pallas_call(
        functools.partial(_gaussian_kernel, coeff=coeff),
        out_shape=jax.ShapeDtypeStruct((e_pad, gp), jnp.bfloat16),
        grid=(e_pad // edge_tile,),
        in_specs=[
            pl.BlockSpec((edge_tile, 1), lambda i: (i, 0)),
            pl.BlockSpec((1, gp), lambda i: (0, 0)),
        ],
        out_specs=pl.BlockSpec((edge_tile, gp), lambda i: (i, 0)),
        compiler_params=pltpu.CompilerParams(
            dimension_semantics=("parallel",), vmem_limit_bytes=VMEM_LIMIT),
    )(d_pad.reshape(e_pad, 1).astype(jnp.float32),
      offsets_pad.reshape(1, gp).astype(jnp.float32))


# ------------------- fused conv layer: message + scatter-add + node update -----------

def _conv_layer_kernel(hi_ref, hj_ref, ef_ref, we_ref, scale_ref, shift_ref,
                       at_ref, x_ref, g_ref, bta_ref, o_ref, acc_ref, *, feat):
    @pl.when(pl.program_id(0) == 0)
    def _init():
        acc_ref[...] = jnp.zeros_like(acc_ref)

    # decomposed lin1 + folded eval-mode BatchNorm:  z = (x_i@Wi + x_j@Wj + e@We)*s + t
    z = (hi_ref[...] + hj_ref[...]
         + jnp.dot(ef_ref[...], we_ref[...], preferred_element_type=jnp.float32))
    z = z * scale_ref[...] + shift_ref[...]
    gate = pl.reciprocal(1.0 + jnp.exp(-z[:, :feat]), approx=True)   # sigmoid(z1)
    val = _softplus(z[:, feat:])                                     # softplus(z2)
    msg = (gate * val).astype(jnp.bfloat16)                          # [te, F]

    # exact scatter-add (aggr='add') as a matmul with the transposed one-hot dst matrix
    acc_ref[...] += jnp.dot(at_ref[...], msg, preferred_element_type=jnp.float32)

    @pl.when(pl.program_id(0) == pl.num_programs(0) - 1)
    def _finalize():
        a = acc_ref[...]
        mean = jnp.mean(a, axis=-1, keepdims=True)
        var = jnp.mean((a - mean) ** 2, axis=-1, keepdims=True)
        ln = (a - mean) * lax.rsqrt(var + 1e-5) * g_ref[...] + bta_ref[...]
        o_ref[...] = _softplus(ln + x_ref[...])       # softplus(ln(aggr) + x) residual


def pallas_conv_layer(hi_e, hj_e, edge_feats, w_edge, scale, shift, at, x,
                      ln_gamma, ln_beta, feat, edge_tile):
    e_pad, two_f = hi_e.shape
    n_nodes = x.shape[0]
    gp = edge_feats.shape[1]
    cost = pl.CostEstimate(
        flops=int(2 * e_pad * gp * two_f + 2 * e_pad * n_nodes * feat),
        transcendentals=int(3 * e_pad * feat + n_nodes * feat),
        bytes_accessed=int(hi_e.size * 4 + hj_e.size * 4 + edge_feats.size * 2
                           + at.size * 2 + gp * two_f * 2 + 2 * n_nodes * feat * 4))
    return pl.pallas_call(
        functools.partial(_conv_layer_kernel, feat=feat),
        out_shape=jax.ShapeDtypeStruct((n_nodes, feat), jnp.float32),
        grid=(e_pad // edge_tile,),
        in_specs=[
            pl.BlockSpec((edge_tile, two_f), lambda e: (e, 0)),    # x_i node part (gathered)
            pl.BlockSpec((edge_tile, two_f), lambda e: (e, 0)),    # x_j node part (gathered)
            pl.BlockSpec((edge_tile, gp), lambda e: (e, 0)),       # edge features (bf16)
            pl.BlockSpec((gp, two_f), lambda e: (0, 0)),           # W_edge (bf16)
            pl.BlockSpec((1, two_f), lambda e: (0, 0)),            # BN scale
            pl.BlockSpec((1, two_f), lambda e: (0, 0)),            # BN shift (+ lin1 bias)
            pl.BlockSpec((n_nodes, edge_tile), lambda e: (0, e)),  # A^T scatter matrix
            pl.BlockSpec((n_nodes, feat), lambda e: (0, 0)),       # residual node feats
            pl.BlockSpec((1, feat), lambda e: (0, 0)),             # LN gamma
            pl.BlockSpec((1, feat), lambda e: (0, 0)),             # LN beta
        ],
        out_specs=pl.BlockSpec((n_nodes, feat), lambda e: (0, 0)),
        scratch_shapes=[pltpu.VMEM((n_nodes, feat), jnp.float32)],
        compiler_params=pltpu.CompilerParams(
            dimension_semantics=("arbitrary",), vmem_limit_bytes=VMEM_LIMIT),
        cost_estimate=cost,
    )(hi_e, hj_e, edge_feats, w_edge.astype(jnp.bfloat16),
      scale.reshape(1, two_f), shift.reshape(1, two_f), at, x,
      ln_gamma.reshape(1, feat), ln_beta.reshape(1, feat))


# ------------------- fused dense head: pool + conv_to_fc + fcs + fc_out --------------

def _head_kernel(*refs, num_hidden):
    pool = refs[0][...]
    nodes = refs[1][...]
    h = jnp.dot(pool, nodes, preferred_element_type=jnp.float32)   # scatter-mean readout
    idx = 2
    for _ in range(num_hidden):
        w = refs[idx][...]
        b = refs[idx + 1][...]
        idx += 2
        h = _softplus(jnp.dot(h.astype(jnp.bfloat16), w,
                              preferred_element_type=jnp.float32) + b)
    w = refs[idx][...]
    b = refs[idx + 1][...]
    o_ref = refs[idx + 2]
    o_ref[...] = jnp.dot(h.astype(jnp.bfloat16), w,
                         preferred_element_type=jnp.float32) + b


def pallas_head(pool, node_feats, hidden_layers, w_out, b_out):
    """One kernel for the whole dense head; all weights easily fit in VMEM."""
    n_graphs, n_nodes = pool.shape
    feat = node_feats.shape[1]
    n_targets = w_out.shape[1]
    inputs = [pool.astype(jnp.float32), node_feats]
    in_specs = [pl.BlockSpec((n_graphs, n_nodes), lambda i: (0, 0)),
                pl.BlockSpec((n_nodes, feat), lambda i: (0, 0))]
    for w, b in hidden_layers:
        inputs += [w.astype(jnp.bfloat16), b.reshape(1, -1).astype(jnp.float32)]
        in_specs += [pl.BlockSpec(w.shape, lambda i: (0, 0)),
                     pl.BlockSpec((1, b.shape[0]), lambda i: (0, 0))]
    inputs += [w_out.astype(jnp.bfloat16), b_out.reshape(1, n_targets).astype(jnp.float32)]
    in_specs += [pl.BlockSpec(w_out.shape, lambda i: (0, 0)),
                 pl.BlockSpec((1, n_targets), lambda i: (0, 0))]
    return pl.pallas_call(
        functools.partial(_head_kernel, num_hidden=len(hidden_layers)),
        out_shape=jax.ShapeDtypeStruct((n_graphs, n_targets), jnp.float32),
        grid=(1,),
        in_specs=in_specs,
        out_specs=pl.BlockSpec((n_graphs, n_targets), lambda i: (0, 0)),
        compiler_params=pltpu.CompilerParams(vmem_limit_bytes=VMEM_LIMIT),
    )(*inputs)


# ----------------------------- parameters -------------------------------------------

def _xavier_uniform(key, fan_in, fan_out):
    limit = (6.0 / (fan_in + fan_out)) ** 0.5
    return jax.random.uniform(key, (fan_in, fan_out), jnp.float32, -limit, limit)


def init_cgcnn_params(key, *, khot_dim, num_features, num_gaussians,
                      fc_feat_size, num_fc_layers, num_conv_layers, num_targets):
    F, G = num_features, num_gaussians
    gp = _round_up(G, 128)
    khot_pad = _round_up(khot_dim, 128)
    bn_eps = 1e-5

    keys = list(jax.random.split(key, 4 + num_conv_layers + num_fc_layers))
    ki = iter(keys)

    params = {}
    # synthetic KHOT embedding table (100 elements x khot_dim), zero-padded to 128 lanes
    emb = jax.random.bernoulli(next(ki), 0.4, (100, khot_dim)).astype(jnp.float32)
    params["embedding"] = jnp.pad(emb, ((0, 0), (0, khot_pad - khot_dim)))

    nuc_w = _xavier_uniform(next(ki), khot_dim, F)
    params["nuc_w"] = jnp.pad(nuc_w, ((0, khot_pad - khot_dim), (0, 0)))
    params["nuc_b"] = jnp.zeros((F,), jnp.float32)

    convs = []
    for _ in range(num_conv_layers):
        w = _xavier_uniform(next(ki), 2 * F + G, 2 * F)     # lin1 weight (xavier), bias=0
        b = jnp.zeros((2 * F,), jnp.float32)
        # BatchNorm1d (eval after reset): y*scale + shift with scale=1/sqrt(1+eps)
        bn_scale = jnp.full((2 * F,), 1.0 / (1.0 + bn_eps) ** 0.5, jnp.float32)
        bn_shift = jnp.zeros((2 * F,), jnp.float32)
        convs.append({
            # decomposed lin1: node part [W_i | W_j] and zero-padded edge part
            "w_node": jnp.concatenate([w[:F], w[F:2 * F]], axis=1),       # [F, 4F]
            "node_b": jnp.zeros((4 * F,), jnp.float32),
            "w_edge": jnp.pad(w[2 * F:], ((0, gp - G), (0, 0))),          # [Gp, 2F]
            "scale": bn_scale,
            "shift": bn_shift + b * bn_scale,                             # folds lin1 bias
            "ln_gamma": jnp.ones((F,), jnp.float32),
            "ln_beta": jnp.zeros((F,), jnp.float32),
        })
    params["convs"] = convs

    params["conv_to_fc_w"] = _xavier_uniform(next(ki), F, fc_feat_size)
    params["conv_to_fc_b"] = jnp.zeros((fc_feat_size,), jnp.float32)
    fcs = []
    for _ in range(num_fc_layers - 1):
        fcs.append((_xavier_uniform(next(ki), fc_feat_size, fc_feat_size),
                    jnp.zeros((fc_feat_size,), jnp.float32)))
    params["fcs"] = fcs
    params["out_w"] = _xavier_uniform(next(ki), fc_feat_size, num_targets)
    params["out_b"] = jnp.zeros((num_targets,), jnp.float32)
    return params


# ----------------------------- model forward -----------------------------------------

def cgcnn_forward(params, atomic_numbers, positions, batch, neighbors_index, *,
                  num_graphs, num_features, cutoff, num_gaussians, edge_tile=256):
    n_nodes = atomic_numbers.shape[0]
    feat = num_features
    src = neighbors_index[0]      # j (message source)
    dst = neighbors_index[1]      # i (aggregation target)
    n_edges = src.shape[0]

    # fixed edge tiling: pad E up to a tile multiple (never a single full-E block)
    te = min(edge_tile, _round_up(n_edges, 8))
    e_pad = _round_up(n_edges, te)
    pad = e_pad - n_edges
    if pad:
        src_g = jnp.concatenate([src, jnp.zeros((pad,), src.dtype)])
        dst_g = jnp.concatenate([dst, jnp.zeros((pad,), dst.dtype)])
        dst_scatter = jnp.concatenate([dst, jnp.full((pad,), -1, dst.dtype)])
    else:
        src_g, dst_g, dst_scatter = src, dst, dst

    # --- embedding lookup + nuclear embedding linear (khot padded to 128) ---
    x0 = params["embedding"][atomic_numbers - 1]                     # [N, khot_pad]
    node_feats = pallas_linear(x0, params["nuc_w"], params["nuc_b"])  # [N, F] f32

    # --- edge distances + Gaussian smearing (G padded to 128 lanes) ---
    # TODO(synk): radius_graph_pbc / neighbor-list construction stays outside Pallas.
    d = jnp.linalg.norm(positions[src] - positions[dst], axis=-1).astype(jnp.float32)
    if pad:
        d = jnp.concatenate([d, jnp.zeros((pad,), jnp.float32)])
    g = num_gaussians
    gp = _round_up(g, 128)
    offsets = jnp.linspace(0.0, cutoff, g).astype(jnp.float32)
    # pad offsets with a huge value so padded Gaussian columns underflow to exactly 0
    offsets = jnp.concatenate([offsets, jnp.full((gp - g,), 1e3, jnp.float32)])
    coeff = -0.5 / float((cutoff / (g - 1)) ** 2)
    edge_feats = pallas_gaussian_smearing(d, offsets, coeff, te)     # [E_pad, Gp] bf16

    # transposed one-hot scatter matrix: padded edges -> all-zero columns (exact add).
    # TODO(synk): switch to sorted-segment scalar-prefetch aggregation when the dense
    #             [N, E] matrix would not fit (very large graphs).
    at = (dst_scatter[None, :] == jnp.arange(n_nodes, dtype=jnp.int32)[:, None]
          ).astype(jnp.bfloat16)

    two_f = 2 * feat
    for conv in params["convs"]:
        # decomposed lin1: node-level projection [x@W_i | x@W_j] computed at N rows
        h_nodes = pallas_linear(node_feats, conv["w_node"], conv["node_b"])  # [N, 4F]
        hi_e = jnp.take(h_nodes[:, :two_f], dst_g, axis=0)   # x_i part per edge [E_pad,2F]
        hj_e = jnp.take(h_nodes[:, two_f:], src_g, axis=0)   # x_j part per edge
        node_feats = pallas_conv_layer(
            hi_e, hj_e, edge_feats, conv["w_edge"], conv["scale"], conv["shift"],
            at, node_feats, conv["ln_gamma"], conv["ln_beta"], feat, te)

    # --- graph readout (scatter-mean as pooling matmul) + fused dense head ---
    onehot = (batch[None, :] == jnp.arange(num_graphs)[:, None]).astype(jnp.float32)
    pool = onehot / jnp.maximum(onehot.sum(axis=1, keepdims=True), 1.0)   # [B, N]
    hidden = [(params["conv_to_fc_w"], params["conv_to_fc_b"])] + list(params["fcs"])
    return pallas_head(pool, node_feats, hidden, params["out_w"], params["out_b"])


# ----------------------------- main ---------------------------------------------------

if __name__ == "__main__":
    NUM_FEATURES = 64
    NUM_GAUSSIANS = 100
    KHOT_DIM = 92
    FC_FEAT = 128
    NUM_FC = 4
    NUM_CONV = 6
    NUM_TARGETS = 1
    CUTOFF = 6.0

    NUM_GRAPHS = 2
    ATOMS_PER_GRAPH = 16
    N = NUM_GRAPHS * ATOMS_PER_GRAPH          # 32 nodes
    EDGES_PER_GRAPH = 64
    E = NUM_GRAPHS * EDGES_PER_GRAPH          # 128 edges

    key = jax.random.PRNGKey(0)
    kp, ka, kx, ke1, ke2 = jax.random.split(key, 5)

    params = init_cgcnn_params(
        kp, khot_dim=KHOT_DIM, num_features=NUM_FEATURES,
        num_gaussians=NUM_GAUSSIANS, fc_feat_size=FC_FEAT,
        num_fc_layers=NUM_FC, num_conv_layers=NUM_CONV, num_targets=NUM_TARGETS)

    atomic_numbers = jax.random.randint(ka, (N,), 1, 101, dtype=jnp.int32)
    positions = jax.random.normal(kx, (N, 3), jnp.float32) * 2.0
    batch = jnp.repeat(jnp.arange(NUM_GRAPHS, dtype=jnp.int32), ATOMS_PER_GRAPH)

    # synthetic within-graph edge list [2, E]
    src = jax.random.randint(ke1, (NUM_GRAPHS, EDGES_PER_GRAPH), 0, ATOMS_PER_GRAPH)
    dst = jax.random.randint(ke2, (NUM_GRAPHS, EDGES_PER_GRAPH), 0, ATOMS_PER_GRAPH)
    graph_off = (jnp.arange(NUM_GRAPHS) * ATOMS_PER_GRAPH)[:, None]
    neighbors_index = jnp.stack([(src + graph_off).reshape(-1),
                                 (dst + graph_off).reshape(-1)], axis=0).astype(jnp.int32)

    forward = jax.jit(functools.partial(
        cgcnn_forward, num_graphs=NUM_GRAPHS, num_features=NUM_FEATURES,
        cutoff=CUTOFF, num_gaussians=NUM_GAUSSIANS))
    energy = jax.block_until_ready(forward(
        params, atomic_numbers, positions, batch, neighbors_index))

    assert energy.shape == (NUM_GRAPHS, NUM_TARGETS)
    assert bool(jnp.all(jnp.isfinite(energy)))
    print("KERNEL_OK")
</pallas_src>

<mosaic_0001>
module attributes {stable_mosaic.version = 11 : i64} {
  func.func @_linear_kernel(%arg0: i32, %arg1: memref<32x64xbf16, #tpu.memory_space<vmem>>, %arg2: memref<64x256xbf16, #tpu.memory_space<vmem>>, %arg3: memref<1x256xf32, #tpu.memory_space<vmem>>, %arg4: memref<32x256xf32, #tpu.memory_space<vmem>>) attributes {dimension_semantics = [#tpu.dimension_semantics<parallel>], iteration_bounds = array<i64: 1>, scalar_prefetch = 0 : i64, scratch_operands = 0 : i64, tpu.core_type = #tpu.core_type<tc>, window_params = [{transform_indices = @transform_0, window_bounds = array<i64: 32, 64>}, {pipeline_mode = #tpu.pipeline_mode<synchronous>, transform_indices = @transform_1, window_bounds = array<i64: 64, 256>}, {pipeline_mode = #tpu.pipeline_mode<synchronous>, transform_indices = @transform_2, window_bounds = array<i64: 1, 256>}, {transform_indices = @transform_3, window_bounds = array<i64: 32, 256>}]} {
    %c0 = arith.constant 0 : index
    %c0_0 = arith.constant 0 : index
    %0 = vector.load %arg1[%c0, %c0_0] : memref<32x64xbf16, #tpu.memory_space<vmem>>, vector<32x64xbf16>
    %c0_1 = arith.constant 0 : index
    %c0_2 = arith.constant 0 : index
    %1 = vector.load %arg2[%c0_1, %c0_2] : memref<64x256xbf16, #tpu.memory_space<vmem>>, vector<64x256xbf16>
    %cst = arith.constant dense<0.000000e+00> : vector<32x256xf32>
    %2 = tpu.matmul %0, %1, %cst {dimension_numbers = #tpu.dot_dimension_numbers<[1], [0], [0], [1], [0, 0, 1, 1], [], []>} : vector<32x64xbf16>, vector<64x256xbf16>, vector<32x256xf32> -> vector<32x256xf32>
    %c0_3 = arith.constant 0 : index
    %c0_4 = arith.constant 0 : index
    %3 = vector.load %arg3[%c0_3, %c0_4] : memref<1x256xf32, #tpu.memory_space<vmem>>, vector<1x256xf32>
    %4 = vector.broadcast %3 : vector<1x256xf32> to vector<32x256xf32>
    %5 = arith.addf %2, %4 : vector<32x256xf32>
    %c0_5 = arith.constant 0 : index
    %c0_6 = arith.constant 0 : index
    %6 = vector.load %arg4[%c0_5, %c0_6] : memref<32x256xf32, #tpu.memory_space<vmem>>, vector<32x256xf32>
    tpu.vector_store %arg4[%c0_5, %c0_6], %5 {strides = array<i32>} : memref<32x256xf32, #tpu.memory_space<vmem>>, vector<32x256xf32>,
    return
  }
  func.func @transform_0(%arg0: i32) -> (i32, i32) {
    %c0_i32 = arith.constant 0 : i32
    %c0_i32_0 = arith.constant 0 : i32
    return %arg0, %c0_i32 : i32, i32
  }
  func.func @transform_1(%arg0: i32) -> (i32, i32) {
    %c0_i32 = arith.constant 0 : i32
    %c0_i32_0 = arith.constant 0 : i32
    %c0_i32_1 = arith.constant 0 : i32
    return %c0_i32, %c0_i32_0 : i32, i32
  }
  func.func @transform_2(%arg0: i32) -> (i32, i32) {
    %c0_i32 = arith.constant 0 : i32
    %c0_i32_0 = arith.constant 0 : i32
    %c0_i32_1 = arith.constant 0 : i32
    return %c0_i32, %c0_i32_0 : i32, i32
  }
  func.func @transform_3(%arg0: i32) -> (i32, i32) {
    %c0_i32 = arith.constant 0 : i32
    %c0_i32_0 = arith.constant 0 : i32
    return %arg0, %c0_i32 : i32, i32
  }
}

module attributes {stable_mosaic.version = 11 : i64} {
  func.func @_linear_kernel(%arg0: i32, %arg1: memref<32x128xbf16, #tpu.memory_space<vmem>>, %arg2: memref<128x64xbf16, #tpu.memory_space<vmem>>, %arg3: memref<1x64xf32, #tpu.memory_space<vmem>>, %arg4: memref<32x64xf32, #tpu.memory_space<vmem>>) attributes {dimension_semantics = [#tpu.dimension_semantics<parallel>], iteration_bounds = array<i64: 1>, scalar_prefetch = 0 : i64, scratch_operands = 0 : i64, tpu.core_type = #tpu.core_type<tc>, window_params = [{transform_indices = @transform_0, window_bounds = array<i64: 32, 128>}, {pipeline_mode = #tpu.pipeline_mode<synchronous>, transform_indices = @transform_1, window_bounds = array<i64: 128, 64>}, {pipeline_mode = #tpu.pipeline_mode<synchronous>, transform_indices = @transform_2, window_bounds = array<i64: 1, 64>}, {transform_indices = @transform_3, window_bounds = array<i64: 32, 64>}]} {
    %c0 = arith.constant 0 : index
    %c0_0 = arith.constant 0 : index
    %0 = vector.load %arg1[%c0, %c0_0] : memref<32x128xbf16, #tpu.memory_space<vmem>>, vector<32x128xbf16>
    %c0_1 = arith.constant 0 : index
    %c0_2 = arith.constant 0 : index
    %1 = vector.load %arg2[%c0_1, %c0_2] : memref<128x64xbf16, #tpu.memory_space<vmem>>, vector<128x64xbf16>
    %cst = arith.constant dense<0.000000e+00> : vector<32x64xf32>
    %2 = tpu.matmul %0, %1, %cst {dimension_numbers = #tpu.dot_dimension_numbers<[1], [0], [0], [1], [0, 0, 1, 1], [], []>} : vector<32x128xbf16>, vector<128x64xbf16>, vector<32x64xf32> -> vector<32x64xf32>
    %c0_3 = arith.constant 0 : index
    %c0_4 = arith.constant 0 : index
    %3 = vector.load %arg3[%c0_3, %c0_4] : memref<1x64xf32, #tpu.memory_space<vmem>>, vector<1x64xf32>
    %4 = vector.broadcast %3 : vector<1x64xf32> to vector<32x64xf32>
    %5 = arith.addf %2, %4 : vector<32x64xf32>
    %c0_5 = arith.constant 0 : index
    %c0_6 = arith.constant 0 : index
    %6 = vector.load %arg4[%c0_5, %c0_6] : memref<32x64xf32, #tpu.memory_space<vmem>>, vector<32x64xf32>
    tpu.vector_store %arg4[%c0_5, %c0_6], %5 {strides = array<i32>} : memref<32x64xf32, #tpu.memory_space<vmem>>, vector<32x64xf32>,
    return
  }
  func.func @transform_0(%arg0: i32) -> (i32, i32) {
    %c0_i32 = arith.constant 0 : i32
    %c0_i32_0 = arith.constant 0 : i32
    return %arg0, %c0_i32 : i32, i32
  }
  func.func @transform_1(%arg0: i32) -> (i32, i32) {
    %c0_i32 = arith.constant 0 : i32
    %c0_i32_0 = arith.constant 0 : i32
    %c0_i32_1 = arith.constant 0 : i32
    return %c0_i32, %c0_i32_0 : i32, i32
  }
  func.func @transform_2(%arg0: i32) -> (i32, i32) {
    %c0_i32 = arith.constant 0 : i32
    %c0_i32_0 = arith.constant 0 : i32
    %c0_i32_1 = arith.constant 0 : i32
    return %c0_i32, %c0_i32_0 : i32, i32
  }
  func.func @transform_3(%arg0: i32) -> (i32, i32) {
    %c0_i32 = arith.constant 0 : i32
    %c0_i32_0 = arith.constant 0 : i32
    return %arg0, %c0_i32 : i32, i32
  }
}

module attributes {stable_mosaic.version = 11 : i64} {
  func.func @_gaussian_kernel(%arg0: i32, %arg1: memref<128x1xf32, #tpu.memory_space<vmem>>, %arg2: memref<1x128xf32, #tpu.memory_space<vmem>>, %arg3: memref<128x128xbf16, #tpu.memory_space<vmem>>) attributes {dimension_semantics = [#tpu.dimension_semantics<parallel>], iteration_bounds = array<i64: 1>, scalar_prefetch = 0 : i64, scratch_operands = 0 : i64, tpu.core_type = #tpu.core_type<tc>, window_params = [{transform_indices = @transform_0, window_bounds = array<i64: 128, 1>}, {pipeline_mode = #tpu.pipeline_mode<synchronous>, transform_indices = @transform_1, window_bounds = array<i64: 1, 128>}, {transform_indices = @transform_2, window_bounds = array<i64: 128, 128>}]} {
    %c0 = arith.constant 0 : index
    %c0_0 = arith.constant 0 : index
    %0 = vector.load %arg1[%c0, %c0_0] : memref<128x1xf32, #tpu.memory_space<vmem>>, vector<128x1xf32>
    %c0_1 = arith.constant 0 : index
    %c0_2 = arith.constant 0 : index
    %1 = vector.load %arg2[%c0_1, %c0_2] : memref<1x128xf32, #tpu.memory_space<vmem>>, vector<1x128xf32>
    %2 = vector.broadcast %0 : vector<128x1xf32> to vector<128x128xf32>
    %3 = vector.broadcast %1 : vector<1x128xf32> to vector<128x128xf32>
    %4 = arith.subf %2, %3 : vector<128x128xf32>
    %5 = arith.mulf %4, %4 : vector<128x128xf32>
    %cst = arith.constant -1.361250e+02 : f32
    %6 = vector.broadcast %cst : f32 to vector<128x128xf32>
    %7 = arith.mulf %6, %5 : vector<128x128xf32>
    %8 = math.exp %7 : vector<128x128xf32>
    %9 = arith.truncf %8 : vector<128x128xf32> to vector<128x128xbf16>
    %c0_3 = arith.constant 0 : index
    %c0_4 = arith.constant 0 : index
    %10 = vector.load %arg3[%c0_3, %c0_4] : memref<128x128xbf16, #tpu.memory_space<vmem>>, vector<128x128xbf16>
    tpu.vector_store %arg3[%c0_3, %c0_4], %9 {strides = array<i32>} : memref<128x128xbf16, #tpu.memory_space<vmem>>, vector<128x128xbf16>,
    return
  }
  func.func @transform_0(%arg0: i32) -> (i32, i32) {
    %c0_i32 = arith.constant 0 : i32
    %c0_i32_0 = arith.constant 0 : i32
    return %arg0, %c0_i32 : i32, i32
  }
  func.func @transform_1(%arg0: i32) -> (i32, i32) {
    %c0_i32 = arith.constant 0 : i32
    %c0_i32_0 = arith.constant 0 : i32
    %c0_i32_1 = arith.constant 0 : i32
    return %c0_i32, %c0_i32_0 : i32, i32
  }
  func.func @transform_2(%arg0: i32) -> (i32, i32) {
    %c0_i32 = arith.constant 0 : i32
    %c0_i32_0 = arith.constant 0 : i32
    return %arg0, %c0_i32 : i32, i32
  }
}

module attributes {stable_mosaic.version = 11 : i64} {
  func.func @_conv_layer_kernel(%arg0: i32, %arg1: memref<128x128xf32, #tpu.memory_space<vmem>>, %arg2: memref<128x128xf32, #tpu.memory_space<vmem>>, %arg3: memref<128x128xbf16, #tpu.memory_space<vmem>>, %arg4: memref<128x128xbf16, #tpu.memory_space<vmem>>, %arg5: memref<1x128xf32, #tpu.memory_space<vmem>>, %arg6: memref<1x128xf32, #tpu.memory_space<vmem>>, %arg7: memref<32x128xbf16, #tpu.memory_space<vmem>>, %arg8: memref<32x64xf32, #tpu.memory_space<vmem>>, %arg9: memref<1x64xf32, #tpu.memory_space<vmem>>, %arg10: memref<1x64xf32, #tpu.memory_space<vmem>>, %arg11: memref<32x64xf32, #tpu.memory_space<vmem>>, %arg12: memref<32x64xf32, #tpu.memory_space<vmem>>) attributes {dimension_semantics = [#tpu.dimension_semantics<arbitrary>], iteration_bounds = array<i64: 1>, scalar_prefetch = 0 : i64, scratch_operands = 1 : i64, tpu.core_type = #tpu.core_type<tc>, window_params = [{transform_indices = @transform_0, window_bounds = array<i64: 128, 128>}, {transform_indices = @transform_1, window_bounds = array<i64: 128, 128>}, {transform_indices = @transform_2, window_bounds = array<i64: 128, 128>}, {pipeline_mode = #tpu.pipeline_mode<synchronous>, transform_indices = @transform_3, window_bounds = array<i64: 128, 128>}, {pipeline_mode = #tpu.pipeline_mode<synchronous>, transform_indices = @transform_4, window_bounds = array<i64: 1, 128>}, {pipeline_mode = #tpu.pipeline_mode<synchronous>, transform_indices = @transform_5, window_bounds = array<i64: 1, 128>}, {transform_indices = @transform_6, window_bounds = array<i64: 32, 128>}, {pipeline_mode = #tpu.pipeline_mode<synchronous>, transform_indices = @transform_7, window_bounds = array<i64: 32, 64>}, {pipeline_mode = #tpu.pipeline_mode<synchronous>, transform_indices = @transform_8, window_bounds = array<i64: 1, 64>}, {pipeline_mode = #tpu.pipeline_mode<synchronous>, transform_indices = @transform_9, window_bounds = array<i64: 1, 64>}, {pipeline_mode = #tpu.pipeline_mode<synchronous>, transform_indices = @transform_10, window_bounds = array<i64: 32, 64>}]} {
    %c0_i32 = arith.constant 0 : i32
    %0 = arith.cmpi eq, %arg0, %c0_i32 : i32
    %1 = arith.extui %0 : i1 to i32
    %c0_i32_0 = arith.constant 0 : i32
    %2 = arith.cmpi ne, %1, %c0_i32_0 : i32
    scf.if %2 {
      %cst_25 = arith.constant 0.000000e+00 : f32
      %42 = vector.broadcast %cst_25 : f32 to vector<32x64xf32>
      %c0_26 = arith.constant 0 : index
      %c0_27 = arith.constant 0 : index
      %43 = vector.load %arg12[%c0_26, %c0_27] : memref<32x64xf32, #tpu.memory_space<vmem>>, vector<32x64xf32>
      tpu.vector_store %arg12[%c0_26, %c0_27], %42 {strides = array<i32>} : memref<32x64xf32, #tpu.memory_space<vmem>>, vector<32x64xf32>,
    } else {
    }
    %c0 = arith.constant 0 : index
    %c0_1 = arith.constant 0 : index
    %3 = vector.load %arg1[%c0, %c0_1] : memref<128x128xf32, #tpu.memory_space<vmem>>, vector<128x128xf32>
    %c0_2 = arith.constant 0 : index
    %c0_3 = arith.constant 0 : index
    %4 = vector.load %arg2[%c0_2, %c0_3] : memref<128x128xf32, #tpu.memory_space<vmem>>, vector<128x128xf32>
    %5 = arith.addf %3, %4 : vector<128x128xf32>
    %c0_4 = arith.constant 0 : index
    %c0_5 = arith.constant 0 : index
    %6 = vector.load %arg3[%c0_4, %c0_5] : memref<128x128xbf16, #tpu.memory_space<vmem>>, vector<128x128xbf16>
    %c0_6 = arith.constant 0 : index
    %c0_7 = arith.constant 0 : index
    %7 = vector.load %arg4[%c0_6, %c0_7] : memref<128x128xbf16, #tpu.memory_space<vmem>>, vector<128x128xbf16>
    %cst = arith.constant dense<0.000000e+00> : vector<128x128xf32>
    %8 = tpu.matmul %6, %7, %cst {dimension_numbers = #tpu.dot_dimension_numbers<[1], [0], [0], [1], [0, 0, 1, 1], [], []>} : vector<128x128xbf16>, vector<128x128xbf16>, vector<128x128xf32> -> vector<128x128xf32>
    %9 = arith.addf %5, %8 : vector<128x128xf32>
    %c0_8 = arith.constant 0 : index
    %c0_9 = arith.constant 0 : index
    %10 = vector.load %arg5[%c0_8, %c0_9] : memref<1x128xf32, #tpu.memory_space<vmem>>, vector<1x128xf32>
    %11 = vector.broadcast %10 : vector<1x128xf32> to vector<128x128xf32>
    %12 = arith.mulf %9, %11 : vector<128x128xf32>
    %c0_10 = arith.constant 0 : index
    %c0_11 = arith.constant 0 : index
    %13 = vector.load %arg6[%c0_10, %c0_11] : memref<1x128xf32, #tpu.memory_space<vmem>>, vector<1x128xf32>
    %14 = vector.broadcast %13 : vector<1x128xf32> to vector<128x128xf32>
    %15 = arith.addf %12, %14 : vector<128x128xf32>
    %16 = vector.extract_strided_slice %15 {offsets = [0, 0], sizes = [128, 64], strides = [1, 1]} : vector<128x128xf32> to vector<128x64xf32>
    %cst_12 = arith.constant 0.000000e+00 : f32
    %17 = vector.broadcast %cst_12 : f32 to vector<128x64xf32>
    %18 = arith.subf %17, %16 : vector<128x64xf32>
    %19 = math.exp %18 : vector<128x64xf32>
    %cst_13 = arith.constant 1.000000e+00 : f32
    %20 = vector.broadcast %cst_13 : f32 to vector<128x64xf32>
    %21 = arith.addf %20, %19 : vector<128x64xf32>
    %22 = tpu.reciprocal %21 {approx = true} : vector<128x64xf32> -> vector<128x64xf32>
    %23 = vector.extract_strided_slice %15 {offsets = [0, 64], sizes = [128, 64], strides = [1, 1]} : vector<128x128xf32> to vector<128x64xf32>
    %cst_14 = arith.constant 0.000000e+00 : f32
    %24 = vector.broadcast %cst_14 : f32 to vector<128x64xf32>
    %25 = arith.maximumf %23, %24 : vector<128x64xf32>
    %26 = math.absf %23 : vector<128x64xf32>
    %cst_15 = arith.constant 0.000000e+00 : f32
    %27 = vector.broadcast %cst_15 : f32 to vector<128x64xf32>
    %28 = arith.subf %27, %26 : vector<128x64xf32>
    %29 = math.exp %28 : vector<128x64xf32>
    %30 = math.log1p %29 : vector<128x64xf32>
    %31 = arith.addf %25, %30 : vector<128x64xf32>
    %32 = arith.mulf %22, %31 : vector<128x64xf32>
    %33 = arith.truncf %32 : vector<128x64xf32> to vector<128x64xbf16>
    %c0_16 = arith.constant 0 : index
    %c0_17 = arith.constant 0 : index
    %34 = vector.load %arg12[%c0_16, %c0_17] : memref<32x64xf32, #tpu.memory_space<vmem>>, vector<32x64xf32>
    %c0_18 = arith.constant 0 : index
    %c0_19 = arith.constant 0 : index
    %35 = vector.load %arg7[%c0_18, %c0_19] : memref<32x128xbf16, #tpu.memory_space<vmem>>, vector<32x128xbf16>
    %cst_20 = arith.constant dense<0.000000e+00> : vector<32x64xf32>
    %36 = tpu.matmul %35, %33, %cst_20 {dimension_numbers = #tpu.dot_dimension_numbers<[1], [0], [0], [1], [0, 0, 1, 1], [], []>} : vector<32x128xbf16>, vector<128x64xbf16>, vector<32x64xf32> -> vector<32x64xf32>
    %37 = arith.addf %34, %36 : vector<32x64xf32>
    %c0_21 = arith.constant 0 : index
    %c0_22 = arith.constant 0 : index
    %38 = vector.load %arg12[%c0_21, %c0_22] : memref<32x64xf32, #tpu.memory_space<vmem>>, vector<32x64xf32>
    tpu.vector_store %arg12[%c0_21, %c0_22], %37 {strides = array<i32>} : memref<32x64xf32, #tpu.memory_space<vmem>>, vector<32x64xf32>,
    %c0_i32_23 = arith.constant 0 : i32
    %39 = arith.cmpi eq, %arg0, %c0_i32_23 : i32
    %40 = arith.extui %39 : i1 to i32
    %c0_i32_24 = arith.constant 0 : i32
    %41 = arith.cmpi ne, %40, %c0_i32_24 : i32
    scf.if %41 {
      %c0_25 = arith.constant 0 : index
      %c0_26 = arith.constant 0 : index
      %42 = vector.load %arg12[%c0_25, %c0_26] : memref<32x64xf32, #tpu.memory_space<vmem>>, vector<32x64xf32>
      %cst_27 = arith.constant dense<0.000000e+00> : vector<32xf32>
      %43 = vector.multi_reduction <add>, %42, %cst_27 [1] : vector<32x64xf32> to vector<32xf32>
      %44 = vector.shape_cast %43 : vector<32xf32> to vector<32x1xf32>
      %cst_28 = arith.constant 6.400000e+01 : f32
      %45 = vector.broadcast %cst_28 : f32 to vector<32x1xf32>
      %46 = arith.divf %44, %45 : vector<32x1xf32>
      %47 = vector.broadcast %46 : vector<32x1xf32> to vector<32x64xf32>
      %48 = arith.subf %42, %47 : vector<32x64xf32>
      %49 = arith.mulf %48, %48 : vector<32x64xf32>
      %cst_29 = arith.constant dense<0.000000e+00> : vector<32xf32>
      %50 = vector.multi_reduction <add>, %49, %cst_29 [1] : vector<32x64xf32> to vector<32xf32>
      %51 = vector.shape_cast %50 : vector<32xf32> to vector<32x1xf32>
      %cst_30 = arith.constant 6.400000e+01 : f32
      %52 = vector.broadcast %cst_30 : f32 to vector<32x1xf32>
      %53 = arith.divf %51, %52 : vector<32x1xf32>
      %54 = vector.broadcast %46 : vector<32x1xf32> to vector<32x64xf32>
      %55 = arith.subf %42, %54 : vector<32x64xf32>
      %cst_31 = arith.constant 9.99999974E-6 : f32
      %56 = vector.broadcast %cst_31 : f32 to vector<32x1xf32>
      %57 = arith.addf %53, %56 : vector<32x1xf32>
      %58 = math.rsqrt %57 : vector<32x1xf32>
      %59 = vector.broadcast %58 : vector<32x1xf32> to vector<32x64xf32>
      %60 = arith.mulf %55, %59 : vector<32x64xf32>
      %c0_32 = arith.constant 0 : index
      %c0_33 = arith.constant 0 : index
      %61 = vector.load %arg9[%c0_32, %c0_33] : memref<1x64xf32, #tpu.memory_space<vmem>>, vector<1x64xf32>
      %62 = vector.broadcast %61 : vector<1x64xf32> to vector<32x64xf32>
      %63 = arith.mulf %60, %62 : vector<32x64xf32>
      %c0_34 = arith.constant 0 : index
      %c0_35 = arith.constant 0 : index
      %64 = vector.load %arg10[%c0_34, %c0_35] : memref<1x64xf32, #tpu.memory_space<vmem>>, vector<1x64xf32>
      %65 = vector.broadcast %64 : vector<1x64xf32> to vector<32x64xf32>
      %66 = arith.addf %63, %65 : vector<32x64xf32>
      %c0_36 = arith.constant 0 : index
      %c0_37 = arith.constant 0 : index
      %67 = vector.load %arg8[%c0_36, %c0_37] : memref<32x64xf32, #tpu.memory_space<vmem>>, vector<32x64xf32>
      %68 = arith.addf %66, %67 : vector<32x64xf32>
      %cst_38 = arith.constant 0.000000e+00 : f32
      %69 = vector.broadcast %cst_38 : f32 to vector<32x64xf32>
      %70 = arith.maximumf %68, %69 : vector<32x64xf32>
      %71 = math.absf %68 : vector<32x64xf32>
      %cst_39 = arith.constant 0.000000e+00 : f32
      %72 = vector.broadcast %cst_39 : f32 to vector<32x64xf32>
      %73 = arith.subf %72, %71 : vector<32x64xf32>
      %74 = math.exp %73 : vector<32x64xf32>
      %75 = math.log1p %74 : vector<32x64xf32>
      %76 = arith.addf %70, %75 : vector<32x64xf32>
      %c0_40 = arith.constant 0 : index
      %c0_41 = arith.constant 0 : index
      %77 = vector.load %arg11[%c0_40, %c0_41] : memref<32x64xf32, #tpu.memory_space<vmem>>, vector<32x64xf32>
      tpu.vector_store %arg11[%c0_40, %c0_41], %76 {strides = array<i32>} : memref<32x64xf32, #tpu.memory_space<vmem>>, vector<32x64xf32>,
    } else {
    }
    return
  }
  func.func @transform_0(%arg0: i32) -> (i32, i32) {
    %c0_i32 = arith.constant 0 : i32
    %c0_i32_0 = arith.constant 0 : i32
    return %arg0, %c0_i32 : i32, i32
  }
  func.func @transform_1(%arg0: i32) -> (i32, i32) {
    %c0_i32 = arith.constant 0 : i32
    %c0_i32_0 = arith.constant 0 : i32
    return %arg0, %c0_i32 : i32, i32
  }
  func.func @transform_2(%arg0: i32) -> (i32, i32) {
    %c0_i32 = arith.constant 0 : i32
    %c0_i32_0 = arith.constant 0 : i32
    return %arg0, %c0_i32 : i32, i32
  }
  func.func @transform_3(%arg0: i32) -> (i32, i32) {
    %c0_i32 = arith.constant 0 : i32
    %c0_i32_0 = arith.constant 0 : i32
    %c0_i32_1 = arith.constant 0 : i32
    return %c0_i32, %c0_i32_0 : i32, i32
  }
  func.func @transform_4(%arg0: i32) -> (i32, i32) {
    %c0_i32 = arith.constant 0 : i32
    %c0_i32_0 = arith.constant 0 : i32
    %c0_i32_1 = arith.constant 0 : i32
    return %c0_i32, %c0_i32_0 : i32, i32
  }
  func.func @transform_5(%arg0: i32) -> (i32, i32) {
    %c0_i32 = arith.constant 0 : i32
    %c0_i32_0 = arith.constant 0 : i32
    %c0_i32_1 = arith.constant 0 : i32
    return %c0_i32, %c0_i32_0 : i32, i32
  }
  func.func @transform_6(%arg0: i32) -> (i32, i32) {
    %c0_i32 = arith.constant 0 : i32
    %c0_i32_0 = arith.constant 0 : i32
    return %c0_i32, %arg0 : i32, i32
  }
  func.func @transform_7(%arg0: i32) -> (i32, i32) {
    %c0_i32 = arith.constant 0 : i32
    %c0_i32_0 = arith.constant 0 : i32
    %c0_i32_1 = arith.constant 0 : i32
    return %c0_i32, %c0_i32_0 : i32, i32
  }
  func.func @transform_8(%arg0: i32) -> (i32, i32) {
    %c0_i32 = arith.constant 0 : i32
    %c0_i32_0 = arith.constant 0 : i32
    %c0_i32_1 = arith.constant 0 : i32
    return %c0_i32, %c0_i32_0 : i32, i32
  }
  func.func @transform_9(%arg0: i32) -> (i32, i32) {
    %c0_i32 = arith.constant 0 : i32
    %c0_i32_0 = arith.constant 0 : i32
    %c0_i32_1 = arith.constant 0 : i32
    return %c0_i32, %c0_i32_0 : i32, i32
  }
  func.func @transform_10(%arg0: i32) -> (i32, i32) {
    %c0_i32 = arith.constant 0 : i32
    %c0_i32_0 = arith.constant 0 : i32
    %c0_i32_1 = arith.constant 0 : i32
    return %c0_i32, %c0_i32_0 : i32, i32
  }
}

module attributes {stable_mosaic.version = 11 : i64} {
  func.func @_head_kernel(%arg0: i32, %arg1: memref<2x32xf32, #tpu.memory_space<vmem>>, %arg2: memref<32x64xf32, #tpu.memory_space<vmem>>, %arg3: memref<64x128xbf16, #tpu.memory_space<vmem>>, %arg4: memref<1x128xf32, #tpu.memory_space<vmem>>, %arg5: memref<128x128xbf16, #tpu.memory_space<vmem>>, %arg6: memref<1x128xf32, #tpu.memory_space<vmem>>, %arg7: memref<128x128xbf16, #tpu.memory_space<vmem>>, %arg8: memref<1x128xf32, #tpu.memory_space<vmem>>, %arg9: memref<128x128xbf16, #tpu.memory_space<vmem>>, %arg10: memref<1x128xf32, #tpu.memory_space<vmem>>, %arg11: memref<128x1xbf16, #tpu.memory_space<vmem>>, %arg12: memref<1x1xf32, #tpu.memory_space<vmem>>, %arg13: memref<2x1xf32, #tpu.memory_space<vmem>>) attributes {dimension_semantics = [#tpu.dimension_semantics<arbitrary>], iteration_bounds = array<i64: 1>, scalar_prefetch = 0 : i64, scratch_operands = 0 : i64, tpu.core_type = #tpu.core_type<tc>, window_params = [{pipeline_mode = #tpu.pipeline_mode<synchronous>, transform_indices = @transform_0, window_bounds = array<i64: 2, 32>}, {pipeline_mode = #tpu.pipeline_mode<synchronous>, transform_indices = @transform_1, window_bounds = array<i64: 32, 64>}, {pipeline_mode = #tpu.pipeline_mode<synchronous>, transform_indices = @transform_2, window_bounds = array<i64: 64, 128>}, {pipeline_mode = #tpu.pipeline_mode<synchronous>, transform_indices = @transform_3, window_bounds = array<i64: 1, 128>}, {pipeline_mode = #tpu.pipeline_mode<synchronous>, transform_indices = @transform_4, window_bounds = array<i64: 128, 128>}, {pipeline_mode = #tpu.pipeline_mode<synchronous>, transform_indices = @transform_5, window_bounds = array<i64: 1, 128>}, {pipeline_mode = #tpu.pipeline_mode<synchronous>, transform_indices = @transform_6, window_bounds = array<i64: 128, 128>}, {pipeline_mode = #tpu.pipeline_mode<synchronous>, transform_indices = @transform_7, window_bounds = array<i64: 1, 128>}, {pipeline_mode = #tpu.pipeline_mode<synchronous>, transform_indices = @transform_8, window_bounds = array<i64: 128, 128>}, {pipeline_mode = #tpu.pipeline_mode<synchronous>, transform_indices = @transform_9, window_bounds = array<i64: 1, 128>}, {pipeline_mode = #tpu.pipeline_mode<synchronous>, transform_indices = @transform_10, window_bounds = array<i64: 128, 1>}, {pipeline_mode = #tpu.pipeline_mode<synchronous>, transform_indices = @transform_11, window_bounds = array<i64: 1, 1>}, {pipeline_mode = #tpu.pipeline_mode<synchronous>, transform_indices = @transform_12, window_bounds = array<i64: 2, 1>}]} {
    %c0 = arith.constant 0 : index
    %c0_0 = arith.constant 0 : index
    %0 = vector.load %arg1[%c0, %c0_0] : memref<2x32xf32, #tpu.memory_space<vmem>>, vector<2x32xf32>
    %c0_1 = arith.constant 0 : index
    %c0_2 = arith.constant 0 : index
    %1 = vector.load %arg2[%c0_1, %c0_2] : memref<32x64xf32, #tpu.memory_space<vmem>>, vector<32x64xf32>
    %cst = arith.constant dense<0.000000e+00> : vector<2x64xf32>
    %2 = tpu.matmul %0, %1, %cst {dimension_numbers = #tpu.dot_dimension_numbers<[1], [0], [0], [1], [0, 0, 1, 1], [], []>} : vector<2x32xf32>, vector<32x64xf32>, vector<2x64xf32> -> vector<2x64xf32>
    %c0_3 = arith.constant 0 : index
    %c0_4 = arith.constant 0 : index
    %3 = vector.load %arg3[%c0_3, %c0_4] : memref<64x128xbf16, #tpu.memory_space<vmem>>, vector<64x128xbf16>
    %c0_5 = arith.constant 0 : index
    %c0_6 = arith.constant 0 : index
    %4 = vector.load %arg4[%c0_5, %c0_6] : memref<1x128xf32, #tpu.memory_space<vmem>>, vector<1x128xf32>
    %5 = arith.truncf %2 : vector<2x64xf32> to vector<2x64xbf16>
    %cst_7 = arith.constant dense<0.000000e+00> : vector<2x128xf32>
    %6 = tpu.matmul %5, %3, %cst_7 {dimension_numbers = #tpu.dot_dimension_numbers<[1], [0], [0], [1], [0, 0, 1, 1], [], []>} : vector<2x64xbf16>, vector<64x128xbf16>, vector<2x128xf32> -> vector<2x128xf32>
    %7 = vector.broadcast %4 : vector<1x128xf32> to vector<2x128xf32>
    %8 = arith.addf %6, %7 : vector<2x128xf32>
    %cst_8 = arith.constant 0.000000e+00 : f32
    %9 = vector.broadcast %cst_8 : f32 to vector<2x128xf32>
    %10 = arith.maximumf %8, %9 : vector<2x128xf32>
    %11 = math.absf %8 : vector<2x128xf32>
    %cst_9 = arith.constant 0.000000e+00 : f32
    %12 = vector.broadcast %cst_9 : f32 to vector<2x128xf32>
    %13 = arith.subf %12, %11 : vector<2x128xf32>
    %14 = math.exp %13 : vector<2x128xf32>
    %15 = math.log1p %14 : vector<2x128xf32>
    %16 = arith.addf %10, %15 : vector<2x128xf32>
    %c0_10 = arith.constant 0 : index
    %c0_11 = arith.constant 0 : index
    %17 = vector.load %arg5[%c0_10, %c0_11] : memref<128x128xbf16, #tpu.memory_space<vmem>>, vector<128x128xbf16>
    %c0_12 = arith.constant 0 : index
    %c0_13 = arith.constant 0 : index
    %18 = vector.load %arg6[%c0_12, %c0_13] : memref<1x128xf32, #tpu.memory_space<vmem>>, vector<1x128xf32>
    %19 = arith.truncf %16 : vector<2x128xf32> to vector<2x128xbf16>
    %cst_14 = arith.constant dense<0.000000e+00> : vector<2x128xf32>
    %20 = tpu.matmul %19, %17, %cst_14 {dimension_numbers = #tpu.dot_dimension_numbers<[1], [0], [0], [1], [0, 0, 1, 1], [], []>} : vector<2x128xbf16>, vector<128x128xbf16>, vector<2x128xf32> -> vector<2x128xf32>
    %21 = vector.broadcast %18 : vector<1x128xf32> to vector<2x128xf32>
    %22 = arith.addf %20, %21 : vector<2x128xf32>
    %cst_15 = arith.constant 0.000000e+00 : f32
    %23 = vector.broadcast %cst_15 : f32 to vector<2x128xf32>
    %24 = arith.maximumf %22, %23 : vector<2x128xf32>
    %25 = math.absf %22 : vector<2x128xf32>
    %cst_16 = arith.constant 0.000000e+00 : f32
    %26 = vector.broadcast %cst_16 : f32 to vector<2x128xf32>
    %27 = arith.subf %26, %25 : vector<2x128xf32>
    %28 = math.exp %27 : vector<2x128xf32>
    %29 = math.log1p %28 : vector<2x128xf32>
    %30 = arith.addf %24, %29 : vector<2x128xf32>
    %c0_17 = arith.constant 0 : index
    %c0_18 = arith.constant 0 : index
    %31 = vector.load %arg7[%c0_17, %c0_18] : memref<128x128xbf16, #tpu.memory_space<vmem>>, vector<128x128xbf16>
    %c0_19 = arith.constant 0 : index
    %c0_20 = arith.constant 0 : index
    %32 = vector.load %arg8[%c0_19, %c0_20] : memref<1x128xf32, #tpu.memory_space<vmem>>, vector<1x128xf32>
    %33 = arith.truncf %30 : vector<2x128xf32> to vector<2x128xbf16>
    %cst_21 = arith.constant dense<0.000000e+00> : vector<2x128xf32>
    %34 = tpu.matmul %33, %31, %cst_21 {dimension_numbers = #tpu.dot_dimension_numbers<[1], [0], [0], [1], [0, 0, 1, 1], [], []>} : vector<2x128xbf16>, vector<128x128xbf16>, vector<2x128xf32> -> vector<2x128xf32>
    %35 = vector.broadcast %32 : vector<1x128xf32> to vector<2x128xf32>
    %36 = arith.addf %34, %35 : vector<2x128xf32>
    %cst_22 = arith.constant 0.000000e+00 : f32
    %37 = vector.broadcast %cst_22 : f32 to vector<2x128xf32>
    %38 = arith.maximumf %36, %37 : vector<2x128xf32>
    %39 = math.absf %36 : vector<2x128xf32>
    %cst_23 = arith.constant 0.000000e+00 : f32
    %40 = vector.broadcast %cst_23 : f32 to vector<2x128xf32>
    %41 = arith.subf %40, %39 : vector<2x128xf32>
    %42 = math.exp %41 : vector<2x128xf32>
    %43 = math.log1p %42 : vector<2x128xf32>
    %44 = arith.addf %38, %43 : vector<2x128xf32>
    %c0_24 = arith.constant 0 : index
    %c0_25 = arith.constant 0 : index
    %45 = vector.load %arg9[%c0_24, %c0_25] : memref<128x128xbf16, #tpu.memory_space<vmem>>, vector<128x128xbf16>
    %c0_26 = arith.constant 0 : index
    %c0_27 = arith.constant 0 : index
    %46 = vector.load %arg10[%c0_26, %c0_27] : memref<1x128xf32, #tpu.memory_space<vmem>>, vector<1x128xf32>
    %47 = arith.truncf %44 : vector<2x128xf32> to vector<2x128xbf16>
    %cst_28 = arith.constant dense<0.000000e+00> : vector<2x128xf32>
    %48 = tpu.matmul %47, %45, %cst_28 {dimension_numbers = #tpu.dot_dimension_numbers<[1], [0], [0], [1], [0, 0, 1, 1], [], []>} : vector<2x128xbf16>, vector<128x128xbf16>, vector<2x128xf32> -> vector<2x128xf32>
    %49 = vector.broadcast %46 : vector<1x128xf32> to vector<2x128xf32>
    %50 = arith.addf %48, %49 : vector<2x128xf32>
    %cst_29 = arith.constant 0.000000e+00 : f32
    %51 = vector.broadcast %cst_29 : f32 to vector<2x128xf32>
    %52 = arith.maximumf %50, %51 : vector<2x128xf32>
    %53 = math.absf %50 : vector<2x128xf32>
    %cst_30 = arith.constant 0.000000e+00 : f32
    %54 = vector.broadcast %cst_30 : f32 to vector<2x128xf32>
    %55 = arith.subf %54, %53 : vector<2x128xf32>
    %56 = math.exp %55 : vector<2x128xf32>
    %57 = math.log1p %56 : vector<2x128xf32>
    %58 = arith.addf %52, %57 : vector<2x128xf32>
    %c0_31 = arith.constant 0 : index
    %c0_32 = arith.constant 0 : index
    %59 = vector.load %arg11[%c0_31, %c0_32] : memref<128x1xbf16, #tpu.memory_space<vmem>>, vector<128x1xbf16>
    %c0_33 = arith.constant 0 : index
    %c0_34 = arith.constant 0 : index
    %60 = vector.load %arg12[%c0_33, %c0_34] : memref<1x1xf32, #tpu.memory_space<vmem>>, vector<1x1xf32>
    %61 = arith.truncf %58 : vector<2x128xf32> to vector<2x128xbf16>
    %cst_35 = arith.constant dense<0.000000e+00> : vector<2x1xf32>
    %62 = tpu.matmul %61, %59, %cst_35 {dimension_numbers = #tpu.dot_dimension_numbers<[1], [0], [0], [1], [0, 0, 1, 1], [], []>} : vector<2x128xbf16>, vector<128x1xbf16>, vector<2x1xf32> -> vector<2x1xf32>
    %63 = vector.broadcast %60 : vector<1x1xf32> to vector<2x1xf32>
    %64 = arith.addf %62, %63 : vector<2x1xf32>
    %c0_36 = arith.constant 0 : index
    %c0_37 = arith.constant 0 : index
    %65 = vector.load %arg13[%c0_36, %c0_37] : memref<2x1xf32, #tpu.memory_space<vmem>>, vector<2x1xf32>
    tpu.vector_store %arg13[%c0_36, %c0_37], %64 {strides = array<i32>} : memref<2x1xf32, #tpu.memory_space<vmem>>, vector<2x1xf32>,
    return
  }
  func.func @transform_0(%arg0: i32) -> (i32, i32) {
    %c0_i32 = arith.constant 0 : i32
    %c0_i32_0 = arith.constant 0 : i32
    %c0_i32_1 = arith.constant 0 : i32
    return %c0_i32, %c0_i32_0 : i32, i32
  }
  func.func @transform_1(%arg0: i32) -> (i32, i32) {
    %c0_i32 = arith.constant 0 : i32
    %c0_i32_0 = arith.constant 0 : i32
    %c0_i32_1 = arith.constant 0 : i32
    return %c0_i32, %c0_i32_0 : i32, i32
  }
  func.func @transform_2(%arg0: i32) -> (i32, i32) {
    %c0_i32 = arith.constant 0 : i32
    %c0_i32_0 = arith.constant 0 : i32
    %c0_i32_1 = arith.constant 0 : i32
    return %c0_i32, %c0_i32_0 : i32, i32
  }
  func.func @transform_3(%arg0: i32) -> (i32, i32) {
    %c0_i32 = arith.constant 0 : i32
    %c0_i32_0 = arith.constant 0 : i32
    %c0_i32_1 = arith.constant 0 : i32
    return %c0_i32, %c0_i32_0 : i32, i32
  }
  func.func @transform_4(%arg0: i32) -> (i32, i32) {
    %c0_i32 = arith.constant 0 : i32
    %c0_i32_0 = arith.constant 0 : i32
    %c0_i32_1 = arith.constant 0 : i32
    return %c0_i32, %c0_i32_0 : i32, i32
  }
  func.func @transform_5(%arg0: i32) -> (i32, i32) {
    %c0_i32 = arith.constant 0 : i32
    %c0_i32_0 = arith.constant 0 : i32
    %c0_i32_1 = arith.constant 0 : i32
    return %c0_i32, %c0_i32_0 : i32, i32
  }
  func.func @transform_6(%arg0: i32) -> (i32, i32) {
    %c0_i32 = arith.constant 0 : i32
    %c0_i32_0 = arith.constant 0 : i32
    %c0_i32_1 = arith.constant 0 : i32
    return %c0_i32, %c0_i32_0 : i32, i32
  }
  func.func @transform_7(%arg0: i32) -> (i32, i32) {
    %c0_i32 = arith.constant 0 : i32
    %c0_i32_0 = arith.constant 0 : i32
    %c0_i32_1 = arith.constant 0 : i32
    return %c0_i32, %c0_i32_0 : i32, i32
  }
  func.func @transform_8(%arg0: i32) -> (i32, i32) {
    %c0_i32 = arith.constant 0 : i32
    %c0_i32_0 = arith.constant 0 : i32
    %c0_i32_1 = arith.constant 0 : i32
    return %c0_i32, %c0_i32_0 : i32, i32
  }
  func.func @transform_9(%arg0: i32) -> (i32, i32) {
    %c0_i32 = arith.constant 0 : i32
    %c0_i32_0 = arith.constant 0 : i32
    %c0_i32_1 = arith.constant 0 : i32
    return %c0_i32, %c0_i32_0 : i32, i32
  }
  func.func @transform_10(%arg0: i32) -> (i32, i32) {
    %c0_i32 = arith.constant 0 : i32
    %c0_i32_0 = arith.constant 0 : i32
    %c0_i32_1 = arith.constant 0 : i32
    return %c0_i32, %c0_i32_0 : i32, i32
  }
  func.func @transform_11(%arg0: i32) -> (i32, i32) {
    %c0_i32 = arith.constant 0 : i32
    %c0_i32_0 = arith.constant 0 : i32
    %c0_i32_1 = arith.constant 0 : i32
    return %c0_i32, %c0_i32_0 : i32, i32
  }
  func.func @transform_12(%arg0: i32) -> (i32, i32) {
    %c0_i32 = arith.constant 0 : i32
    %c0_i32_0 = arith.constant 0 : i32
    %c0_i32_1 = arith.constant 0 : i32
    return %c0_i32, %c0_i32_0 : i32, i32
  }
}

</mosaic_0001>

<llo_original>
// kernel: cgcnn_forward.15
$region0: #{cgcnn_forward.15}
  #allocation0 [shape = 'u32[]', space=smem, size = 0x4, offset = 0x4, fixed_abs, tag = 'smem constant byte address 0x4 - core index']
  #allocation1 [shape = 'u32[144,128]{1,0:T(1,128)}', space=vmem, size = 0x12000, scoped, tag = 'internal scratch']
  %s0 = inlined_call_operand.vmem [shape: bf16[32,128], index: 0, kind: input, shape index: {}]
  %s1 = inlined_call_operand.vmem [shape: bf16[128,64], index: 1, kind: input, shape index: {}]
  %s2 = inlined_call_operand.vmem [shape: f32[1,64], index: 2, kind: input, shape index: {}]
  %s3 = inlined_call_operand.vmem [shape: f32[32,64], index: 3, kind: output, shape index: {}]
  %s4 = sld [smem:[#allocation0]]
  $region22: #{cgcnn_forward.15} parent=0
    _
  %s6 = ssub.s32 1, %s4
  %s7 = scalar_select 0, %s6, %s4
  // Predicated region
  $region2: #{cgcnn_forward.15} parent=0 // pred_check
    _
  $region3: #{cgcnn_forward.15} parent=0 // pred_check_branch
    %9 = sbr.rel (0) target = $region5
  $region4: #{cgcnn_forward.15} parent=0 // pred_region
    _
  $region5: #{cgcnn_forward.15} parent=0 // pred_fallthru
    _
  // Predicated region
  $region6: #{cgcnn_forward.15} parent=0 // pred_check
    _
  $region7: #{cgcnn_forward.15} parent=0 // pred_check_branch
    %11 = sbr.rel (0) target = $region9
  $region8: #{cgcnn_forward.15} parent=0 // pred_region
    _
  $region9: #{cgcnn_forward.15} parent=0 // pred_fallthru
    _
  // Predicated region
  $region10: #{cgcnn_forward.15} parent=0 // pred_check
    _
  $region11: #{cgcnn_forward.15} parent=0 // pred_check_branch
    %13 = sbr.rel (0) target = $region13
  $region12: #{cgcnn_forward.15} parent=0 // pred_region
    _
  $region13: #{cgcnn_forward.15} parent=0 // pred_fallthru
    _
  %v15 = vld [vmem:[%s0] sm:$0xf]
  %v16 = vld [vmem:[%s0 + $0x4] sm:$0xf]
  %v17 = vld [vmem:[%s0 + $0x8] sm:$0xf]
  %v18 = vld [vmem:[%s0 + $0xc] sm:$0xf]
  %v19 = vld [vmem:[%s1] sm:$0xf]
  %v20 = vld [vmem:[%s1 + $0x4] sm:$0xf]
  %v21 = vld [vmem:[%s1 + $0x8] sm:$0xf]
  %v22 = vld [vmem:[%s1 + $0xc] sm:$0xf]
  %v23 = vld [vmem:[%s1 + $0x10] sm:$0xf]
  %v24 = vld [vmem:[%s1 + $0x14] sm:$0xf]
  %v25 = vld [vmem:[%s1 + $0x18] sm:$0xf]
  %v26 = vld [vmem:[%s1 + $0x1c] sm:$0xf]
  %v27 = vld [vmem:[%s1 + $0x20] sm:$0xf]
  %v28 = vld [vmem:[%s1 + $0x24] sm:$0xf]
  %v29 = vld [vmem:[%s1 + $0x28] sm:$0xf]
  %v30 = vld [vmem:[%s1 + $0x2c] sm:$0xf]
  %v31 = vld [vmem:[%s1 + $0x30] sm:$0xf]
  %v32 = vld [vmem:[%s1 + $0x34] sm:$0xf]
  %v33 = vld [vmem:[%s1 + $0x38] sm:$0xf]
  %v34 = vld [vmem:[%s1 + $0x3c] sm:$0xf]
  %v35 = vld [vmem:[%s2] sm:$0x1]
  %v37 = vlaneseq
  %v38 = vshrl.u32 %v37, 7
  %v39 = vsub.s32 0, %v38
  %v40 = vrot.slane %v35, %v39
  %v46 = vunpack.c.l.b16 %v15
  %v47 = vunpack.c.l.b16 %v16
  %v48 = vunpack.c.l.b16 %v17
  %v49 = vunpack.c.l.b16 %v18
  %v50 = vpack.c.b16 %v47, %v46
  %v51 = vpack.c.b16 %v49, %v48
  %v70 = vunpack.c.l.b16 %v19
  %v71 = vunpack.c.l.b16 %v20
  %v72 = vunpack.c.l.b16 %v21
  %v73 = vunpack.c.l.b16 %v22
  %v74 = vunpack.c.l.b16 %v23
  %v75 = vunpack.c.l.b16 %v24
  %v76 = vunpack.c.l.b16 %v25
  %v77 = vunpack.c.l.b16 %v26
  %v78 = vunpack.c.l.b16 %v27
  %v79 = vunpack.c.l.b16 %v28
  %v80 = vunpack.c.l.b16 %v29
  %v81 = vunpack.c.l.b16 %v30
  %v82 = vunpack.c.l.b16 %v31
  %v83 = vunpack.c.l.b16 %v32
  %v84 = vunpack.c.l.b16 %v33
  %v85 = vunpack.c.l.b16 %v34
  %v86 = vpack.c.b16 %v71, %v70
  %v87 = vpack.c.b16 %v73, %v72
  %v88 = vpack.c.b16 %v75, %v74
  %v89 = vpack.c.b16 %v77, %v76
  %v90 = vpack.c.b16 %v79, %v78
  %v91 = vpack.c.b16 %v81, %v80
  %v92 = vpack.c.b16 %v83, %v82
  %v93 = vpack.c.b16 %v85, %v84
  %102 = vmatprep.subr.bf16.mxu0 0
  %103 = vmatpush1.bf16.msra.mxu0 %v93
  %104 = vmatprep.subr.bf16.mxu0 0
  %105 = vmatpush1.bf16.msra.mxu0 %v92
  %106 = vmatprep.subr.bf16.mxu0 0
  %107 = vmatpush1.bf16.msra.mxu0 %v91
  %108 = vmatprep.subr.bf16.mxu0 0
  %109 = vmatpush1.bf16.msra.mxu0 %v90
  %110 = vmatprep.subr.bf16.mxu0 0
  %111 = vmatpush1.bf16.msra.mxu0 %v89
  %112 = vmatprep.subr.bf16.mxu0 0
  %113 = vmatpush1.bf16.msra.mxu0 %v88
  %114 = vmatprep.subr.bf16.mxu0 0
  %115 = vmatpush1.bf16.msra.mxu0 %v87
  %116 = vmatprep.subr.bf16.mxu0 0
  %117 = vmatpush1.bf16.msra.mxu0 %v86
  %118 = vmatprep.subr.bf16.mxu0 0
  %119 = vmatpush2.bf16.msra.mxu0 0
  %120 = vmatprep.subr.bf16.mxu0 0
  %121 = vmatpush2.bf16.msra.mxu0 0
  %122 = vmatprep.subr.bf16.mxu0 0
  %123 = vmatpush2.bf16.msra.mxu0 0
  %124 = vmatprep.subr.bf16.mxu0 0
  %125 = vmatpush2.bf16.msra.mxu0 0
  %126 = vmatprep.subr.bf16.mxu0 0
  %127 = vmatpush2.bf16.msra.mxu0 0
  %128 = vmatprep.subr.bf16.mxu0 0
  %129 = vmatpush2.bf16.msra.mxu0 0
  %130 = vmatprep.subr.bf16.mxu0 0
  %131 = vmatpush2.bf16.msra.mxu0 0
  %132 = vmatprep.subr.bf16.mxu0 0
  %133 = vmatpush2.bf16.msra.mxu0 0
  %134 = vmatprep.mubr.bf16.mxu0 0
  %135 = vmatmul.mubr.bf16.gmra.mxu0 %v50
  %v136 = vpop.f32.mrf.mxu0
  %v137 = vadd.f32 %v40, %v136
  %v138 = vpop.f32.mrf.mxu0
  %v139 = vpop.f32.mrf.mxu0
  %v140 = vadd.f32 %v40, %v139
  %v141 = vpop.f32.mrf.mxu0
  %142 = vmatprep.mubr.bf16.mxu0 0
  %143 = vmatmul.mubr.bf16.gmra.mxu0 %v51
  %v144 = vpop.f32.mrf.mxu0
  %v145 = vadd.f32 %v40, %v144
  %v146 = vpop.f32.mrf.mxu0
  %v147 = vpop.f32.mrf.mxu0
  %v148 = vadd.f32 %v40, %v147
  %v149 = vpop.f32.mrf.mxu0
  %150 = vdwg.mxu0
  %vm151 = vcmask 523264
  %152 = vst.msk [vmem:[%s3] sm:$0xff] %vm151, %v137
  %153 = vst.msk [vmem:[%s3 + $0x8] sm:$0xff] %vm151, %v140
  %154 = vst.msk [vmem:[%s3 + $0x10] sm:$0xff] %vm151, %v145
  %155 = vst.msk [vmem:[%s3 + $0x18] sm:$0xff] %vm151, %v148
  // Predicated region
  $region14: #{cgcnn_forward.15} parent=0 // pred_check
    _
  $region15: #{cgcnn_forward.15} parent=0 // pred_check_branch
    %157 = sbr.rel (0) target = $region17
  $region16: #{cgcnn_forward.15} parent=0 // pred_region
    _
  $region17: #{cgcnn_forward.15} parent=0 // pred_fallthru
    _
  // Predicated region
  $region18: #{cgcnn_forward.15} parent=0 // pred_check
    _
  $region19: #{cgcnn_forward.15} parent=0 // pred_check_branch
    %159 = sbr.rel (0) target = $region21
  $region20: #{cgcnn_forward.15} parent=0 // pred_region
    _
  $region21: #{cgcnn_forward.15} parent=0 // pred_fallthru
    _

// kernel: cgcnn_forward.17
$region0: #{cgcnn_forward.17}
  #allocation0 [shape = 'u32[]', space=smem, size = 0x4, offset = 0x4, fixed_abs, tag = 'smem constant byte address 0x4 - core index']
  #allocation1 [shape = 'u32[144,128]{1,0:T(1,128)}', space=vmem, size = 0x12000, scoped, tag = 'internal scratch']
  %s0 = inlined_call_operand.vmem [shape: bf16[32,64], index: 0, kind: input, shape index: {}]
  %s1 = inlined_call_operand.vmem [shape: bf16[64,256], index: 1, kind: input, shape index: {}]
  %s2 = inlined_call_operand.vmem [shape: f32[1,256], index: 2, kind: input, shape index: {}]
  %s3 = inlined_call_operand.vmem [shape: f32[32,256], index: 3, kind: output, shape index: {}]
  %s4 = sld [smem:[#allocation0]]
  $region22: #{cgcnn_forward.17} parent=0
    _
  %s6 = ssub.s32 1, %s4
  %s7 = scalar_select 0, %s6, %s4
  // Predicated region
  $region2: #{cgcnn_forward.17} parent=0 // pred_check
    _
  $region3: #{cgcnn_forward.17} parent=0 // pred_check_branch
    %9 = sbr.rel (0) target = $region5
  $region4: #{cgcnn_forward.17} parent=0 // pred_region
    _
  $region5: #{cgcnn_forward.17} parent=0 // pred_fallthru
    _
  // Predicated region
  $region6: #{cgcnn_forward.17} parent=0 // pred_check
    _
  $region7: #{cgcnn_forward.17} parent=0 // pred_check_branch
    %11 = sbr.rel (0) target = $region9
  $region8: #{cgcnn_forward.17} parent=0 // pred_region
    _
  $region9: #{cgcnn_forward.17} parent=0 // pred_fallthru
    _
  // Predicated region
  $region10: #{cgcnn_forward.17} parent=0 // pred_check
    _
  $region11: #{cgcnn_forward.17} parent=0 // pred_check_branch
    %13 = sbr.rel (0) target = $region13
  $region12: #{cgcnn_forward.17} parent=0 // pred_region
    _
  $region13: #{cgcnn_forward.17} parent=0 // pred_fallthru
    _
  %v15 = vld [vmem:[%s0] sm:$0xf]
  %v16 = vld [vmem:[%s0 + $0x4] sm:$0xf]
  %v17 = vld [vmem:[%s0 + $0x8] sm:$0xf]
  %v18 = vld [vmem:[%s0 + $0xc] sm:$0xf]
  %v19 = vld [vmem:[%s1] sm:$0xff]
  %v20 = vld [vmem:[%s1 + $0x8] sm:$0xff]
  %v21 = vld [vmem:[%s1 + $0x10] sm:$0xff]
  %v22 = vld [vmem:[%s1 + $0x18] sm:$0xff]
  %v23 = vld [vmem:[%s1 + $0x20] sm:$0xff]
  %v24 = vld [vmem:[%s1 + $0x28] sm:$0xff]
  %v25 = vld [vmem:[%s1 + $0x30] sm:$0xff]
  %v26 = vld [vmem:[%s1 + $0x38] sm:$0xff]
  %v27 = vld [vmem:[%s2] sm:$0x3]
  %v29 = vlaneseq
  %v30 = vshrl.u32 %v29, 7
  %v31 = vsub.s32 0, %v30
  %v32 = vrot.slane %v27, %v31
  %v33 = vlaneseq
  %v34 = vshrl.u32 %v33, 7
  %v35 = vsub.s32 1, %v34
  %v36 = vrot.slane %v27, %v35
  %v43 = vunpack.c.l.b16 %v15
  %v44 = vunpack.c.l.b16 %v16
  %v45 = vunpack.c.l.b16 %v17
  %v46 = vunpack.c.l.b16 %v18
  %v47 = vpack.c.b16 %v44, %v43
  %v48 = vpack.c.b16 %v46, %v45
  %v57 = vunpack.c.l.b16 %v19
  %v58 = vunpack.c.h.b16 %v19
  %v59 = vunpack.c.l.b16 %v20
  %v60 = vunpack.c.h.b16 %v20
  %v61 = vunpack.c.l.b16 %v21
  %v62 = vunpack.c.h.b16 %v21
  %v63 = vunpack.c.l.b16 %v22
  %v64 = vunpack.c.h.b16 %v22
  %v65 = vunpack.c.l.b16 %v23
  %v66 = vunpack.c.h.b16 %v23
  %v67 = vunpack.c.l.b16 %v24
  %v68 = vunpack.c.h.b16 %v24
  %v69 = vunpack.c.l.b16 %v25
  %v70 = vunpack.c.h.b16 %v25
  %v71 = vunpack.c.l.b16 %v26
  %v72 = vunpack.c.h.b16 %v26
  %v73 = vpack.c.b16 %v59, %v57
  %v74 = vpack.c.b16 %v60, %v58
  %v75 = vpack.c.b16 %v63, %v61
  %v76 = vpack.c.b16 %v64, %v62
  %v77 = vpack.c.b16 %v67, %v65
  %v78 = vpack.c.b16 %v68, %v66
  %v79 = vpack.c.b16 %v71, %v69
  %v80 = vpack.c.b16 %v72, %v70
  %vm89 = vcmask 523264
  %v91 = vsel %vm89, %v47, 0
  %v94 = vsel %vm89, %v48, 0
  %96 = vmatprep.subr.bf16.mxu0 0
  %97 = vmatpush1.bf16.msra.mxu0 0
  %98 = vmatprep.subr.bf16.mxu0 0
  %99 = vmatpush1.bf16.msra.mxu0 0
  %100 = vmatprep.subr.bf16.mxu0 0
  %101 = vmatpush1.bf16.msra.mxu0 0
  %102 = vmatprep.subr.bf16.mxu0 0
  %103 = vmatpush1.bf16.msra.mxu0 0
  %104 = vmatprep.subr.bf16.mxu0 %v80
  %105 = vmatpush1.bf16.msra.mxu0 %v79
  %106 = vmatprep.subr.bf16.mxu0 %v78
  %107 = vmatpush1.bf16.msra.mxu0 %v77
  %108 = vmatprep.subr.bf16.mxu0 %v76
  %109 = vmatpush1.bf16.msra.mxu0 %v75
  %110 = vmatprep.subr.bf16.mxu0 %v74
  %111 = vmatpush1.bf16.msra.mxu0 %v73
  %112 = vmatprep.subr.bf16.mxu0 0
  %113 = vmatpush2.bf16.msra.mxu0 0
  %114 = vmatprep.subr.bf16.mxu0 0
  %115 = vmatpush2.bf16.msra.mxu0 0
  %116 = vmatprep.subr.bf16.mxu0 0
  %117 = vmatpush2.bf16.msra.mxu0 0
  %118 = vmatprep.subr.bf16.mxu0 0
  %119 = vmatpush2.bf16.msra.mxu0 0
  %120 = vmatprep.subr.bf16.mxu0 0
  %121 = vmatpush2.bf16.msra.mxu0 0
  %122 = vmatprep.subr.bf16.mxu0 0
  %123 = vmatpush2.bf16.msra.mxu0 0
  %124 = vmatprep.subr.bf16.mxu0 0
  %125 = vmatpush2.bf16.msra.mxu0 0
  %126 = vmatprep.subr.bf16.mxu0 0
  %127 = vmatpush2.bf16.msra.mxu0 0
  %128 = vmatprep.mubr.bf16.mxu0 0
  %129 = vmatmul.mubr.bf16.gmra.mxu0 %v91
  %v130 = vpop.f32.mrf.mxu0
  %v131 = vadd.f32 %v32, %v130
  %v132 = vpop.f32.mrf.mxu0
  %v133 = vadd.f32 %v36, %v132
  %v134 = vpop.f32.mrf.mxu0
  %v135 = vadd.f32 %v32, %v134
  %v136 = vpop.f32.mrf.mxu0
  %v137 = vadd.f32 %v36, %v136
  %138 = vmatprep.mubr.bf16.mxu0 0
  %139 = vmatmul.mubr.bf16.gmra.mxu0 %v94
  %v140 = vpop.f32.mrf.mxu0
  %v141 = vadd.f32 %v32, %v140
  %v142 = vpop.f32.mrf.mxu0
  %v143 = vadd.f32 %v36, %v142
  %v144 = vpop.f32.mrf.mxu0
  %v145 = vadd.f32 %v32, %v144
  %v146 = vpop.f32.mrf.mxu0
  %v147 = vadd.f32 %v36, %v146
  %148 = vdwg.mxu0
  %149 = vst [vmem:[%s3] sm:$0xff] %v131
  %150 = vst [vmem:[%s3 + $0x8] sm:$0xff] %v133
  %151 = vst [vmem:[%s3 + $0x10] sm:$0xff] %v135
  %152 = vst [vmem:[%s3 + $0x18] sm:$0xff] %v137
  %153 = vst [vmem:[%s3 + $0x20] sm:$0xff] %v141
  %154 = vst [vmem:[%s3 + $0x28] sm:$0xff] %v143
  %155 = vst [vmem:[%s3 + $0x30] sm:$0xff] %v145
  %156 = vst [vmem:[%s3 + $0x38] sm:$0xff] %v147
  // Predicated region
  $region14: #{cgcnn_forward.17} parent=0 // pred_check
    _
  $region15: #{cgcnn_forward.17} parent=0 // pred_check_branch
    %158 = sbr.rel (0) target = $region17
  $region16: #{cgcnn_forward.17} parent=0 // pred_region
    _
  $region17: #{cgcnn_forward.17} parent=0 // pred_fallthru
    _
  // Predicated region
  $region18: #{cgcnn_forward.17} parent=0 // pred_check
    _
  $region19: #{cgcnn_forward.17} parent=0 // pred_check_branch
    %160 = sbr.rel (0) target = $region21
  $region20: #{cgcnn_forward.17} parent=0 // pred_region
    _
  $region21: #{cgcnn_forward.17} parent=0 // pred_fallthru
    _

// kernel: cgcnn_forward.16
$region0: #{cgcnn_forward.16}
  #allocation0 [shape = 'u32[]', space=smem, size = 0x4, offset = 0x4, fixed_abs, tag = 'smem constant byte address 0x4 - core index']
  #allocation1 [shape = 'u32[144,128]{1,0:T(1,128)}', space=vmem, size = 0x12000, scoped, tag = 'internal scratch']
  %s0 = inlined_call_operand.vmem [shape: f32[128,1], index: 0, kind: input, shape index: {}]
  %s1 = inlined_call_operand.vmem [shape: f32[1,128], index: 1, kind: input, shape index: {}]
  %s2 = inlined_call_operand.vmem [shape: bf16[128,128], index: 2, kind: output, shape index: {}]
  %s3 = sld [smem:[#allocation0]]
  $region18: #{cgcnn_forward.16} parent=0
    _
  %s5 = ssub.s32 1, %s3
  %s6 = scalar_select 0, %s5, %s3
  // Predicated region
  $region2: #{cgcnn_forward.16} parent=0 // pred_check
    _
  $region3: #{cgcnn_forward.16} parent=0 // pred_check_branch
    %8 = sbr.rel (0) target = $region5
  $region4: #{cgcnn_forward.16} parent=0 // pred_region
    _
  $region5: #{cgcnn_forward.16} parent=0 // pred_fallthru
    _
  // Predicated region
  $region6: #{cgcnn_forward.16} parent=0 // pred_check
    _
  $region7: #{cgcnn_forward.16} parent=0 // pred_check_branch
    %10 = sbr.rel (0) target = $region9
  $region8: #{cgcnn_forward.16} parent=0 // pred_region
    _
  $region9: #{cgcnn_forward.16} parent=0 // pred_fallthru
    _
  %v11 = vld [vmem:[%s0] sm:$0xff]
  %v12 = vld [vmem:[%s0 + $0x8] sm:$0xff]
  %v13 = vld [vmem:[%s0 + $0x10] sm:$0xff]
  %v14 = vld [vmem:[%s0 + $0x18] sm:$0xff]
  %v15 = vld [vmem:[%s0 + $0x20] sm:$0xff]
  %v16 = vld [vmem:[%s0 + $0x28] sm:$0xff]
  %v17 = vld [vmem:[%s0 + $0x30] sm:$0xff]
  %v18 = vld [vmem:[%s0 + $0x38] sm:$0xff]
  %v19 = vld [vmem:[%s0 + $0x40] sm:$0xff]
  %v20 = vld [vmem:[%s0 + $0x48] sm:$0xff]
  %v21 = vld [vmem:[%s0 + $0x50] sm:$0xff]
  %v22 = vld [vmem:[%s0 + $0x58] sm:$0xff]
  %v23 = vld [vmem:[%s0 + $0x60] sm:$0xff]
  %v24 = vld [vmem:[%s0 + $0x68] sm:$0xff]
  %v25 = vld [vmem:[%s0 + $0x70] sm:$0xff]
  %v26 = vld [vmem:[%s0 + $0x78] sm:$0xff]
  %v27 = vld [vmem:[%s1] sm:$0x1]
  %29 = vset.pattern.permute.xlu0 0
  %30 = vperm.xlu0 %29, %v11
  %v31 = vpop.permute.xlu0 %30
  %34 = vset.pattern.permute.xlu0 0
  %35 = vperm.xlu0 %34, %v12
  %v36 = vpop.permute.xlu0 %35
  %39 = vset.pattern.permute.xlu0 0
  %40 = vperm.xlu0 %39, %v13
  %v41 = vpop.permute.xlu0 %40
  %44 = vset.pattern.permute.xlu0 0
  %45 = vperm.xlu0 %44, %v14
  %v46 = vpop.permute.xlu0 %45
  %49 = vset.pattern.permute.xlu0 0
  %50 = vperm.xlu0 %49, %v15
  %v51 = vpop.permute.xlu0 %50
  %54 = vset.pattern.permute.xlu0 0
  %55 = vperm.xlu0 %54, %v16
  %v56 = vpop.permute.xlu0 %55
  %59 = vset.pattern.permute.xlu0 0
  %60 = vperm.xlu0 %59, %v17
  %v61 = vpop.permute.xlu0 %60
  %64 = vset.pattern.permute.xlu0 0
  %65 = vperm.xlu0 %64, %v18
  %v66 = vpop.permute.xlu0 %65
  %69 = vset.pattern.permute.xlu0 0
  %70 = vperm.xlu0 %69, %v19
  %v71 = vpop.permute.xlu0 %70
  %74 = vset.pattern.permute.xlu0 0
  %75 = vperm.xlu0 %74, %v20
  %v76 = vpop.permute.xlu0 %75
  %79 = vset.pattern.permute.xlu0 0
  %80 = vperm.xlu0 %79, %v21
  %v81 = vpop.permute.xlu0 %80
  %84 = vset.pattern.permute.xlu0 0
  %85 = vperm.xlu0 %84, %v22
  %v86 = vpop.permute.xlu0 %85
  %89 = vset.pattern.permute.xlu0 0
  %90 = vperm.xlu0 %89, %v23
  %v91 = vpop.permute.xlu0 %90
  %94 = vset.pattern.permute.xlu0 0
  %95 = vperm.xlu0 %94, %v24
  %v96 = vpop.permute.xlu0 %95
  %99 = vset.pattern.permute.xlu0 0
  %100 = vperm.xlu0 %99, %v25
  %v101 = vpop.permute.xlu0 %100
  %104 = vset.pattern.permute.xlu0 0
  %105 = vperm.xlu0 %104, %v26
  %v106 = vpop.permute.xlu0 %105
  %v109 = vlaneseq
  %v110 = vshrl.u32 %v109, 7
  %v111 = vsub.s32 0, %v110
  %v112 = vrot.slane %v27, %v111
  %v114 = vsub.f32 %v31, %v112
  %v115 = vsub.f32 %v36, %v112
  %v116 = vsub.f32 %v41, %v112
  %v117 = vsub.f32 %v46, %v112
  %v118 = vsub.f32 %v51, %v112
  %v119 = vsub.f32 %v56, %v112
  %v120 = vsub.f32 %v61, %v112
  %v121 = vsub.f32 %v66, %v112
  %v122 = vsub.f32 %v71, %v112
  %v123 = vsub.f32 %v76, %v112
  %v124 = vsub.f32 %v81, %v112
  %v125 = vsub.f32 %v86, %v112
  %v126 = vsub.f32 %v91, %v112
  %v127 = vsub.f32 %v96, %v112
  %v128 = vsub.f32 %v101, %v112
  %v129 = vsub.f32 %v106, %v112
  %v130 = vmul.f32 %v114, %v114
  %v131 = vmul.f32 %v115, %v115
  %v132 = vmul.f32 %v116, %v116
  %v133 = vmul.f32 %v117, %v117
  %v134 = vmul.f32 %v118, %v118
  %v135 = vmul.f32 %v119, %v119
  %v136 = vmul.f32 %v120, %v120
  %v137 = vmul.f32 %v121, %v121
  %v138 = vmul.f32 %v122, %v122
  %v139 = vmul.f32 %v123, %v123
  %v140 = vmul.f32 %v124, %v124
  %v141 = vmul.f32 %v125, %v125
  %v142 = vmul.f32 %v126, %v126
  %v143 = vmul.f32 %v127, %v127
  %v144 = vmul.f32 %v128, %v128
  %v145 = vmul.f32 %v129, %v129
  %v146 = vmul.f32 %v130, -136.125
  %v147 = vmul.f32 %v131, -136.125
  %v148 = vmul.f32 %v132, -136.125
  %v149 = vmul.f32 %v133, -136.125
  %v150 = vmul.f32 %v134, -136.125
  %v151 = vmul.f32 %v135, -136.125
  %v152 = vmul.f32 %v136, -136.125
  %v153 = vmul.f32 %v137, -136.125
  %v154 = vmul.f32 %v138, -136.125
  %v155 = vmul.f32 %v139, -136.125
  %v156 = vmul.f32 %v140, -136.125
  %v157 = vmul.f32 %v141, -136.125
  %v158 = vmul.f32 %v142, -136.125
  %v159 = vmul.f32 %v143, -136.125
  %v160 = vmul.f32 %v144, -136.125
  %v161 = vmul.f32 %v145, -136.125
  %v162 = vmul.f32 %v146, 1.442695
  %v163 = vpow.pop %v162
  %v164 = vmul.f32 %v147, 1.442695
  %v165 = vpow.pop %v164
  %v166 = vmul.f32 %v148, 1.442695
  %v167 = vpow.pop %v166
  %v168 = vmul.f32 %v149, 1.442695
  %v169 = vpow.pop %v168
  %v170 = vmul.f32 %v150, 1.442695
  %v171 = vpow.pop %v170
  %v172 = vmul.f32 %v151, 1.442695
  %v173 = vpow.pop %v172
  %v174 = vmul.f32 %v152, 1.442695
  %v175 = vpow.pop %v174
  %v176 = vmul.f32 %v153, 1.442695
  %v177 = vpow.pop %v176
  %v178 = vmul.f32 %v154, 1.442695
  %v179 = vpow.pop %v178
  %v180 = vmul.f32 %v155, 1.442695
  %v181 = vpow.pop %v180
  %v182 = vmul.f32 %v156, 1.442695
  %v183 = vpow.pop %v182
  %v184 = vmul.f32 %v157, 1.442695
  %v185 = vpow.pop %v184
  %v186 = vmul.f32 %v158, 1.442695
  %v187 = vpow.pop %v186
  %v188 = vmul.f32 %v159, 1.442695
  %v189 = vpow.pop %v188
  %v190 = vmul.f32 %v160, 1.442695
  %v191 = vpow.pop %v190
  %v192 = vmul.f32 %v161, 1.442695
  %v193 = vpow.pop %v192
  %v194 = vpack.c.bf16 %v165, %v163
  %v195 = vpack.c.bf16 %v169, %v167
  %v196 = vpack.c.bf16 %v173, %v171
  %v197 = vpack.c.bf16 %v177, %v175
  %v198 = vpack.c.bf16 %v181, %v179
  %v199 = vpack.c.bf16 %v185, %v183
  %v200 = vpack.c.bf16 %v189, %v187
  %v201 = vpack.c.bf16 %v193, %v191
  %v210 = vunpack.c.l.b16 %v194
  %v211 = vunpack.c.h.b16 %v194
  %v212 = vunpack.c.l.b16 %v195
  %v213 = vunpack.c.h.b16 %v195
  %v214 = vunpack.c.l.b16 %v196
  %v215 = vunpack.c.h.b16 %v196
  %v216 = vunpack.c.l.b16 %v197
  %v217 = vunpack.c.h.b16 %v197
  %v218 = vunpack.c.l.b16 %v198
  %v219 = vunpack.c.h.b16 %v198
  %v220 = vunpack.c.l.b16 %v199
  %v221 = vunpack.c.h.b16 %v199
  %v222 = vunpack.c.l.b16 %v200
  %v223 = vunpack.c.h.b16 %v200
  %v224 = vunpack.c.l.b16 %v201
  %v225 = vunpack.c.h.b16 %v201
  %v226 = vpack.c.b16 %v210, %v210
  %v227 = vpack.c.b16 %v211, %v211
  %v228 = vpack.c.b16 %v212, %v212
  %v229 = vpack.c.b16 %v213, %v213
  %v230 = vpack.c.b16 %v214, %v214
  %v231 = vpack.c.b16 %v215, %v215
  %v232 = vpack.c.b16 %v216, %v216
  %v233 = vpack.c.b16 %v217, %v217
  %v234 = vpack.c.b16 %v218, %v218
  %v235 = vpack.c.b16 %v219, %v219
  %v236 = vpack.c.b16 %v220, %v220
  %v237 = vpack.c.b16 %v221, %v221
  %v238 = vpack.c.b16 %v222, %v222
  %v239 = vpack.c.b16 %v223, %v223
  %v240 = vpack.c.b16 %v224, %v224
  %v241 = vpack.c.b16 %v225, %v225
  %258 = vst [vmem:[%s2] sm:$0xf] %v226
  %259 = vst [vmem:[%s2 + $0x4] sm:$0xf] %v227
  %260 = vst [vmem:[%s2 + $0x8] sm:$0xf] %v228
  %261 = vst [vmem:[%s2 + $0xc] sm:$0xf] %v229
  %262 = vst [vmem:[%s2 + $0x10] sm:$0xf] %v230
  %263 = vst [vmem:[%s2 + $0x14] sm:$0xf] %v231
  %264 = vst [vmem:[%s2 + $0x18] sm:$0xf] %v232
  %265 = vst [vmem:[%s2 + $0x1c] sm:$0xf] %v233
  %266 = vst [vmem:[%s2 + $0x20] sm:$0xf] %v234
  %267 = vst [vmem:[%s2 + $0x24] sm:$0xf] %v235
  %268 = vst [vmem:[%s2 + $0x28] sm:$0xf] %v236
  %269 = vst [vmem:[%s2 + $0x2c] sm:$0xf] %v237
  %270 = vst [vmem:[%s2 + $0x30] sm:$0xf] %v238
  %271 = vst [vmem:[%s2 + $0x34] sm:$0xf] %v239
  %272 = vst [vmem:[%s2 + $0x38] sm:$0xf] %v240
  %273 = vst [vmem:[%s2 + $0x3c] sm:$0xf] %v241
  // Predicated region
  $region10: #{cgcnn_forward.16} parent=0 // pred_check
    _
  $region11: #{cgcnn_forward.16} parent=0 // pred_check_branch
    %275 = sbr.rel (0) target = $region13
  $region12: #{cgcnn_forward.16} parent=0 // pred_region
    _
  $region13: #{cgcnn_forward.16} parent=0 // pred_fallthru
    _
  // Predicated region
  $region14: #{cgcnn_forward.16} parent=0 // pred_check
    _
  $region15: #{cgcnn_forward.16} parent=0 // pred_check_branch
    %277 = sbr.rel (0) target = $region17
  $region16: #{cgcnn_forward.16} parent=0 // pred_region
    _
  $region17: #{cgcnn_forward.16} parent=0 // pred_fallthru
    _

// kernel: cgcnn_forward.18
$region0: #{cgcnn_forward.18}
  #allocation0 [shape = 'u32[]', space=smem, size = 0x4, offset = 0x4, fixed_abs, tag = 'smem constant byte address 0x4 - core index']
  #allocation1 [shape = 'u32[144,128]{1,0:T(1,128)}', space=vmem, size = 0x12000, scoped, tag = 'internal scratch']
  #allocation2 [shape = 'f32[32,64]{1,0:T(8,128)}', space=vmem, size = 0x4000, scoped, tag = 'scratch operand']
  %s0 = inlined_call_operand.vmem [shape: f32[128,128], index: 0, kind: input, shape index: {}]
  %s1 = inlined_call_operand.vmem [shape: f32[128,128], index: 1, kind: input, shape index: {}]
  %s2 = inlined_call_operand.vmem [shape: bf16[128,128], index: 2, kind: input, shape index: {}]
  %s3 = inlined_call_operand.vmem [shape: bf16[128,128], index: 3, kind: input, shape index: {}]
  %s4 = inlined_call_operand.vmem [shape: f32[1,128], index: 4, kind: input, shape index: {}]
  %s5 = inlined_call_operand.vmem [shape: f32[1,128], index: 5, kind: input, shape index: {}]
  %s6 = inlined_call_operand.vmem [shape: bf16[32,128], index: 6, kind: input, shape index: {}]
  %s7 = inlined_call_operand.vmem [shape: f32[32,64], index: 7, kind: input, shape index: {}]
  %s8 = inlined_call_operand.vmem [shape: f32[1,64], index: 8, kind: input, shape index: {}]
  %s9 = inlined_call_operand.vmem [shape: f32[1,64], index: 9, kind: input, shape index: {}]
  %s10 = inlined_call_operand.vmem [shape: f32[32,64], index: 10, kind: output, shape index: {}]
  %s11 = sld [smem:[#allocation0]]
  $region58: #{cgcnn_forward.18} parent=0
    _
  %s13 = ssub.s32 1, %s11
  %s14 = scalar_select 0, %s13, %s11
  // Predicated region
  $region2: #{cgcnn_forward.18} parent=0 // pred_check
    _
  $region3: #{cgcnn_forward.18} parent=0 // pred_check_branch
    %16 = sbr.rel (0) target = $region5
  $region4: #{cgcnn_forward.18} parent=0 // pred_region
    _
  $region5: #{cgcnn_forward.18} parent=0 // pred_fallthru
    _
  // Predicated region
  $region6: #{cgcnn_forward.18} parent=0 // pred_check
    _
  $region7: #{cgcnn_forward.18} parent=0 // pred_check_branch
    %18 = sbr.rel (0) target = $region9
  $region8: #{cgcnn_forward.18} parent=0 // pred_region
    _
  $region9: #{cgcnn_forward.18} parent=0 // pred_fallthru
    _
  // Predicated region
  $region10: #{cgcnn_forward.18} parent=0 // pred_check
    _
  $region11: #{cgcnn_forward.18} parent=0 // pred_check_branch
    %20 = sbr.rel (0) target = $region13
  $region12: #{cgcnn_forward.18} parent=0 // pred_region
    _
  $region13: #{cgcnn_forward.18} parent=0 // pred_fallthru
    _
  // Predicated region
  $region14: #{cgcnn_forward.18} parent=0 // pred_check
    _
  $region15: #{cgcnn_forward.18} parent=0 // pred_check_branch
    %22 = sbr.rel (0) target = $region17
  $region16: #{cgcnn_forward.18} parent=0 // pred_region
    _
  $region17: #{cgcnn_forward.18} parent=0 // pred_fallthru
    _
  // Predicated region
  $region18: #{cgcnn_forward.18} parent=0 // pred_check
    _
  $region19: #{cgcnn_forward.18} parent=0 // pred_check_branch
    %24 = sbr.rel (0) target = $region21
  $region20: #{cgcnn_forward.18} parent=0 // pred_region
    _
  $region21: #{cgcnn_forward.18} parent=0 // pred_fallthru
    _
  // Predicated region
  $region22: #{cgcnn_forward.18} parent=0 // pred_check
    _
  $region23: #{cgcnn_forward.18} parent=0 // pred_check_branch
    %26 = sbr.rel (0) target = $region25
  $region24: #{cgcnn_forward.18} parent=0 // pred_region
    _
  $region25: #{cgcnn_forward.18} parent=0 // pred_fallthru
    _
  // Predicated region
  $region26: #{cgcnn_forward.18} parent=0 // pred_check
    _
  $region27: #{cgcnn_forward.18} parent=0 // pred_check_branch
    %28 = sbr.rel (0) target = $region29
  $region28: #{cgcnn_forward.18} parent=0 // pred_region
    _
  $region29: #{cgcnn_forward.18} parent=0 // pred_fallthru
    _
  // Predicated region
  $region30: #{cgcnn_forward.18} parent=0 // pred_check
    _
  $region31: #{cgcnn_forward.18} parent=0 // pred_check_branch
    %30 = sbr.rel (0) target = $region33
  $region32: #{cgcnn_forward.18} parent=0 // pred_region
    _
  $region33: #{cgcnn_forward.18} parent=0 // pred_fallthru
    _
  // Predicated region
  $region34: #{cgcnn_forward.18} parent=0 // pred_check
    _
  $region35: #{cgcnn_forward.18} parent=0 // pred_check_branch
    %32 = sbr.rel (0) target = $region37
  $region36: #{cgcnn_forward.18} parent=0 // pred_region
    _
  $region37: #{cgcnn_forward.18} parent=0 // pred_fallthru
    _
  // Predicated region
  $region38: #{cgcnn_forward.18} parent=0 // pred_check
    _
  $region39: #{cgcnn_forward.18} parent=0 // pred_check_branch
    %34 = sbr.rel (0) target = $region41
  $region40: #{cgcnn_forward.18} parent=0 // pred_region
    _
  $region41: #{cgcnn_forward.18} parent=0 // pred_fallthru
    _
  %p36 = scmp.eq.s32.totalorder 0, 0
  // Predicated region
  $region42: #{cgcnn_forward.18} parent=0 // pred_check
    %p37 = pneg %p36
  $region43: #{cgcnn_forward.18} parent=0 // pred_check_branch
    %39 = sbr.rel (%p37) target = $region45
  $region44: #{cgcnn_forward.18} parent=0 // pred_region
    %vm40 = vcmask 523264
    %41 = vst.msk [vmem:[#allocation2] sm:$0xff] %vm40, 0.0
    %42 = vst.msk [vmem:[#allocation2 + $0x8] sm:$0xff] %vm40, 0.0
    %43 = vst.msk [vmem:[#allocation2 + $0x10] sm:$0xff] %vm40, 0.0
    %44 = vst.msk [vmem:[#allocation2 + $0x18] sm:$0xff] %vm40, 0.0
  $region45: #{cgcnn_forward.18} parent=0 // pred_fallthru
    _
  %v45 = vld [vmem:[%s0] sm:$0xff]
  %v46 = vld [vmem:[%s0 + $0x8] sm:$0xff]
  %v47 = vld [vmem:[%s0 + $0x10] sm:$0xff]
  %v48 = vld [vmem:[%s0 + $0x18] sm:$0xff]
  %v49 = vld [vmem:[%s0 + $0x20] sm:$0xff]
  %v50 = vld [vmem:[%s0 + $0x28] sm:$0xff]
  %v51 = vld [vmem:[%s0 + $0x30] sm:$0xff]
  %v52 = vld [vmem:[%s0 + $0x38] sm:$0xff]
  %v53 = vld [vmem:[%s0 + $0x40] sm:$0xff]
  %v54 = vld [vmem:[%s0 + $0x48] sm:$0xff]
  %v55 = vld [vmem:[%s0 + $0x50] sm:$0xff]
  %v56 = vld [vmem:[%s0 + $0x58] sm:$0xff]
  %v57 = vld [vmem:[%s0 + $0x60] sm:$0xff]
  %v58 = vld [vmem:[%s0 + $0x68] sm:$0xff]
  %v59 = vld [vmem:[%s0 + $0x70] sm:$0xff]
  %v60 = vld [vmem:[%s0 + $0x78] sm:$0xff]
  %v61 = vld [vmem:[%s1] sm:$0xff]
  %v62 = vld [vmem:[%s1 + $0x8] sm:$0xff]
  %v63 = vld [vmem:[%s1 + $0x10] sm:$0xff]
  %v64 = vld [vmem:[%s1 + $0x18] sm:$0xff]
  %v65 = vld [vmem:[%s1 + $0x20] sm:$0xff]
  %v66 = vld [vmem:[%s1 + $0x28] sm:$0xff]
  %v67 = vld [vmem:[%s1 + $0x30] sm:$0xff]
  %v68 = vld [vmem:[%s1 + $0x38] sm:$0xff]
  %v69 = vld [vmem:[%s1 + $0x40] sm:$0xff]
  %v70 = vld [vmem:[%s1 + $0x48] sm:$0xff]
  %v71 = vld [vmem:[%s1 + $0x50] sm:$0xff]
  %v72 = vld [vmem:[%s1 + $0x58] sm:$0xff]
  %v73 = vld [vmem:[%s1 + $0x60] sm:$0xff]
  %v74 = vld [vmem:[%s1 + $0x68] sm:$0xff]
  %v75 = vld [vmem:[%s1 + $0x70] sm:$0xff]
  %v76 = vld [vmem:[%s1 + $0x78] sm:$0xff]
  %v77 = vadd.f32 %v45, %v61
  %v78 = vadd.f32 %v46, %v62
  %v79 = vadd.f32 %v47, %v63
  %v80 = vadd.f32 %v48, %v64
  %v81 = vadd.f32 %v49, %v65
  %v82 = vadd.f32 %v50, %v66
  %v83 = vadd.f32 %v51, %v67
  %v84 = vadd.f32 %v52, %v68
  %v85 = vadd.f32 %v53, %v69
  %v86 = vadd.f32 %v54, %v70
  %v87 = vadd.f32 %v55, %v71
  %v88 = vadd.f32 %v56, %v72
  %v89 = vadd.f32 %v57, %v73
  %v90 = vadd.f32 %v58, %v74
  %v91 = vadd.f32 %v59, %v75
  %v92 = vadd.f32 %v60, %v76
  %v93 = vld [vmem:[%s2] sm:$0xf]
  %v94 = vld [vmem:[%s2 + $0x4] sm:$0xf]
  %v95 = vld [vmem:[%s2 + $0x8] sm:$0xf]
  %v96 = vld [vmem:[%s2 + $0xc] sm:$0xf]
  %v97 = vld [vmem:[%s2 + $0x10] sm:$0xf]
  %v98 = vld [vmem:[%s2 + $0x14] sm:$0xf]
  %v99 = vld [vmem:[%s2 + $0x18] sm:$0xf]
  %v100 = vld [vmem:[%s2 + $0x1c] sm:$0xf]
  %v101 = vld [vmem:[%s2 + $0x20] sm:$0xf]
  %v102 = vld [vmem:[%s2 + $0x24] sm:$0xf]
  %v103 = vld [vmem:[%s2 + $0x28] sm:$0xf]
  %v104 = vld [vmem:[%s2 + $0x2c] sm:$0xf]
  %v105 = vld [vmem:[%s2 + $0x30] sm:$0xf]
  %v106 = vld [vmem:[%s2 + $0x34] sm:$0xf]
  %v107 = vld [vmem:[%s2 + $0x38] sm:$0xf]
  %v108 = vld [vmem:[%s2 + $0x3c] sm:$0xf]
  %v109 = vld [vmem:[%s3] sm:$0xf]
  %v110 = vld [vmem:[%s3 + $0x4] sm:$0xf]
  %v111 = vld [vmem:[%s3 + $0x8] sm:$0xf]
  %v112 = vld [vmem:[%s3 + $0xc] sm:$0xf]
  %v113 = vld [vmem:[%s3 + $0x10] sm:$0xf]
  %v114 = vld [vmem:[%s3 + $0x14] sm:$0xf]
  %v115 = vld [vmem:[%s3 + $0x18] sm:$0xf]
  %v116 = vld [vmem:[%s3 + $0x1c] sm:$0xf]
  %v117 = vld [vmem:[%s3 + $0x20] sm:$0xf]
  %v118 = vld [vmem:[%s3 + $0x24] sm:$0xf]
  %v119 = vld [vmem:[%s3 + $0x28] sm:$0xf]
  %v120 = vld [vmem:[%s3 + $0x2c] sm:$0xf]
  %v121 = vld [vmem:[%s3 + $0x30] sm:$0xf]
  %v122 = vld [vmem:[%s3 + $0x34] sm:$0xf]
  %v123 = vld [vmem:[%s3 + $0x38] sm:$0xf]
  %v124 = vld [vmem:[%s3 + $0x3c] sm:$0xf]
  %v141 = vunpack.c.l.b16 %v93
  %v142 = vunpack.c.l.b16 %v94
  %v143 = vunpack.c.l.b16 %v95
  %v144 = vunpack.c.l.b16 %v96
  %v145 = vunpack.c.l.b16 %v97
  %v146 = vunpack.c.l.b16 %v98
  %v147 = vunpack.c.l.b16 %v99
  %v148 = vunpack.c.l.b16 %v100
  %v149 = vunpack.c.l.b16 %v101
  %v150 = vunpack.c.l.b16 %v102
  %v151 = vunpack.c.l.b16 %v103
  %v152 = vunpack.c.l.b16 %v104
  %v153 = vunpack.c.l.b16 %v105
  %v154 = vunpack.c.l.b16 %v106
  %v155 = vunpack.c.l.b16 %v107
  %v156 = vunpack.c.l.b16 %v108
  %v157 = vpack.c.b16 %v142, %v141
  %v158 = vpack.c.b16 %v144, %v143
  %v159 = vpack.c.b16 %v146, %v145
  %v160 = vpack.c.b16 %v148, %v147
  %v161 = vpack.c.b16 %v150, %v149
  %v162 = vpack.c.b16 %v152, %v151
  %v163 = vpack.c.b16 %v154, %v153
  %v164 = vpack.c.b16 %v156, %v155
  %v189 = vunpack.c.l.b16 %v109
  %v190 = vunpack.c.l.b16 %v110
  %v191 = vunpack.c.l.b16 %v111
  %v192 = vunpack.c.l.b16 %v112
  %v193 = vunpack.c.l.b16 %v113
  %v194 = vunpack.c.l.b16 %v114
  %v195 = vunpack.c.l.b16 %v115
  %v196 = vunpack.c.l.b16 %v116
  %v197 = vunpack.c.l.b16 %v117
  %v198 = vunpack.c.l.b16 %v118
  %v199 = vunpack.c.l.b16 %v119
  %v200 = vunpack.c.l.b16 %v120
  %v201 = vunpack.c.l.b16 %v121
  %v202 = vunpack.c.l.b16 %v122
  %v203 = vunpack.c.l.b16 %v123
  %v204 = vunpack.c.l.b16 %v124
  %v205 = vpack.c.b16 %v190, %v189
  %v206 = vpack.c.b16 %v192, %v191
  %v207 = vpack.c.b16 %v194, %v193
  %v208 = vpack.c.b16 %v196, %v195
  %v209 = vpack.c.b16 %v198, %v197
  %v210 = vpack.c.b16 %v200, %v199
  %v211 = vpack.c.b16 %v202, %v201
  %v212 = vpack.c.b16 %v204, %v203
  %221 = vmatprep.subr.bf16.mxu0 0
  %222 = vmatpush1.bf16.msra.mxu0 %v212
  %223 = vmatprep.subr.bf16.mxu0 0
  %224 = vmatpush1.bf16.msra.mxu0 %v211
  %225 = vmatprep.subr.bf16.mxu0 0
  %226 = vmatpush1.bf16.msra.mxu0 %v210
  %227 = vmatprep.subr.bf16.mxu0 0
  %228 = vmatpush1.bf16.msra.mxu0 %v209
  %229 = vmatprep.subr.bf16.mxu0 0
  %230 = vmatpush1.bf16.msra.mxu0 %v208
  %231 = vmatprep.subr.bf16.mxu0 0
  %232 = vmatpush1.bf16.msra.mxu0 %v207
  %233 = vmatprep.subr.bf16.mxu0 0
  %234 = vmatpush1.bf16.msra.mxu0 %v206
  %235 = vmatprep.subr.bf16.mxu0 0
  %236 = vmatpush1.bf16.msra.mxu0 %v205
  %237 = vmatprep.subr.bf16.mxu0 0
  %238 = vmatpush2.bf16.msra.mxu0 0
  %239 = vmatprep.subr.bf16.mxu0 0
  %240 = vmatpush2.bf16.msra.mxu0 0
  %241 = vmatprep.subr.bf16.mxu0 0
  %242 = vmatpush2.bf16.msra.mxu0 0
  %243 = vmatprep.subr.bf16.mxu0 0
  %244 = vmatpush2.bf16.msra.mxu0 0
  %245 = vmatprep.subr.bf16.mxu0 0
  %246 = vmatpush2.bf16.msra.mxu0 0
  %247 = vmatprep.subr.bf16.mxu0 0
  %248 = vmatpush2.bf16.msra.mxu0 0
  %249 = vmatprep.subr.bf16.mxu0 0
  %250 = vmatpush2.bf16.msra.mxu0 0
  %251 = vmatprep.subr.bf16.mxu0 0
  %252 = vmatpush2.bf16.msra.mxu0 0
  %253 = vmatprep.mubr.bf16.mxu0 0
  %254 = vmatmul.mubr.bf16.gmra.mxu0 %v157
  %v255 = vpop.f32.mrf.mxu0
  %v256 = vadd.f32 0.0, %v255
  %v257 = vpop.f32.mrf.mxu0
  %v258 = vpop.f32.mrf.mxu0
  %v259 = vadd.f32 0.0, %v258
  %v260 = vpop.f32.mrf.mxu0
  %261 = vmatprep.mubr.bf16.mxu0 0
  %262 = vmatmul.mubr.bf16.gmra.mxu0 %v158
  %v263 = vpop.f32.mrf.mxu0
  %v264 = vadd.f32 0.0, %v263
  %v265 = vpop.f32.mrf.mxu0
  %v266 = vpop.f32.mrf.mxu0
  %v267 = vadd.f32 0.0, %v266
  %v268 = vpop.f32.mrf.mxu0
  %269 = vmatprep.mubr.bf16.mxu0 0
  %270 = vmatmul.mubr.bf16.gmra.mxu0 %v159
  %v271 = vpop.f32.mrf.mxu0
  %v272 = vadd.f32 0.0, %v271
  %v273 = vpop.f32.mrf.mxu0
  %v274 = vpop.f32.mrf.mxu0
  %v275 = vadd.f32 0.0, %v274
  %v276 = vpop.f32.mrf.mxu0
  %277 = vmatprep.mubr.bf16.mxu0 0
  %278 = vmatmul.mubr.bf16.gmra.mxu0 %v160
  %v279 = vpop.f32.mrf.mxu0
  %v280 = vadd.f32 0.0, %v279
  %v281 = vpop.f32.mrf.mxu0
  %v282 = vpop.f32.mrf.mxu0
  %v283 = vadd.f32 0.0, %v282
  %v284 = vpop.f32.mrf.mxu0
  %285 = vmatprep.mubr.bf16.mxu0 0
  %286 = vmatmul.mubr.bf16.gmra.mxu0 %v161
  %v287 = vpop.f32.mrf.mxu0
  %v288 = vadd.f32 0.0, %v287
  %v289 = vpop.f32.mrf.mxu0
  %v290 = vpop.f32.mrf.mxu0
  %v291 = vadd.f32 0.0, %v290
  %v292 = vpop.f32.mrf.mxu0
  %293 = vmatprep.mubr.bf16.mxu0 0
  %294 = vmatmul.mubr.bf16.gmra.mxu0 %v162
  %v295 = vpop.f32.mrf.mxu0
  %v296 = vadd.f32 0.0, %v295
  %v297 = vpop.f32.mrf.mxu0
  %v298 = vpop.f32.mrf.mxu0
  %v299 = vadd.f32 0.0, %v298
  %v300 = vpop.f32.mrf.mxu0
  %301 = vmatprep.mubr.bf16.mxu0 0
  %302 = vmatmul.mubr.bf16.gmra.mxu0 %v163
  %v303 = vpop.f32.mrf.mxu0
  %v304 = vadd.f32 0.0, %v303
  %v305 = vpop.f32.mrf.mxu0
  %v306 = vpop.f32.mrf.mxu0
  %v307 = vadd.f32 0.0, %v306
  %v308 = vpop.f32.mrf.mxu0
  %309 = vmatprep.mubr.bf16.mxu0 0
  %310 = vmatmul.mubr.bf16.gmra.mxu0 %v164
  %v311 = vpop.f32.mrf.mxu0
  %v312 = vadd.f32 0.0, %v311
  %v313 = vpop.f32.mrf.mxu0
  %v314 = vpop.f32.mrf.mxu0
  %v315 = vadd.f32 0.0, %v314
  %v316 = vpop.f32.mrf.mxu0
  %317 = vdwg.mxu0
  %v318 = vadd.f32 %v77, %v256
  %v319 = vadd.f32 %v78, %v259
  %v320 = vadd.f32 %v79, %v264
  %v321 = vadd.f32 %v80, %v267
  %v322 = vadd.f32 %v81, %v272
  %v323 = vadd.f32 %v82, %v275
  %v324 = vadd.f32 %v83, %v280
  %v325 = vadd.f32 %v84, %v283
  %v326 = vadd.f32 %v85, %v288
  %v327 = vadd.f32 %v86, %v291
  %v328 = vadd.f32 %v87, %v296
  %v329 = vadd.f32 %v88, %v299
  %v330 = vadd.f32 %v89, %v304
  %v331 = vadd.f32 %v90, %v307
  %v332 = vadd.f32 %v91, %v312
  %v333 = vadd.f32 %v92, %v315
  %v334 = vld [vmem:[%s4] sm:$0x1]
  %v336 = vlaneseq
  %v337 = vshrl.u32 %v336, 7
  %v338 = vsub.s32 0, %v337
  %v339 = vrot.slane %v334, %v338
  %v341 = vmul.f32 %v318, %v339
  %v342 = vmul.f32 %v319, %v339
  %v343 = vmul.f32 %v320, %v339
  %v344 = vmul.f32 %v321, %v339
  %v345 = vmul.f32 %v322, %v339
  %v346 = vmul.f32 %v323, %v339
  %v347 = vmul.f32 %v324, %v339
  %v348 = vmul.f32 %v325, %v339
  %v349 = vmul.f32 %v326, %v339
  %v350 = vmul.f32 %v327, %v339
  %v351 = vmul.f32 %v328, %v339
  %v352 = vmul.f32 %v329, %v339
  %v353 = vmul.f32 %v330, %v339
  %v354 = vmul.f32 %v331, %v339
  %v355 = vmul.f32 %v332, %v339
  %v356 = vmul.f32 %v333, %v339
  %v357 = vld [vmem:[%s5] sm:$0x1]
  %v359 = vlaneseq
  %v360 = vshrl.u32 %v359, 7
  %v361 = vsub.s32 0, %v360
  %v362 = vrot.slane %v357, %v361
  %v364 = vadd.f32 %v341, %v362
  %v365 = vadd.f32 %v342, %v362
  %v366 = vadd.f32 %v343, %v362
  %v367 = vadd.f32 %v344, %v362
  %v368 = vadd.f32 %v345, %v362
  %v369 = vadd.f32 %v346, %v362
  %v370 = vadd.f32 %v347, %v362
  %v371 = vadd.f32 %v348, %v362
  %v372 = vadd.f32 %v349, %v362
  %v373 = vadd.f32 %v350, %v362
  %v374 = vadd.f32 %v351, %v362
  %v375 = vadd.f32 %v352, %v362
  %v376 = vadd.f32 %v353, %v362
  %v377 = vadd.f32 %v354, %v362
  %v378 = vadd.f32 %v355, %v362
  %v379 = vadd.f32 %v356, %v362
  %v380 = vsub.f32 0.0, %v364
  %v381 = vsub.f32 0.0, %v365
  %v382 = vsub.f32 0.0, %v366
  %v383 = vsub.f32 0.0, %v367
  %v384 = vsub.f32 0.0, %v368
  %v385 = vsub.f32 0.0, %v369
  %v386 = vsub.f32 0.0, %v370
  %v387 = vsub.f32 0.0, %v371
  %v388 = vsub.f32 0.0, %v372
  %v389 = vsub.f32 0.0, %v373
  %v390 = vsub.f32 0.0, %v374
  %v391 = vsub.f32 0.0, %v375
  %v392 = vsub.f32 0.0, %v376
  %v393 = vsub.f32 0.0, %v377
  %v394 = vsub.f32 0.0, %v378
  %v395 = vsub.f32 0.0, %v379
  %v396 = vmul.f32 %v380, 1.442695
  %v397 = vpow.pop %v396
  %v398 = vmul.f32 %v381, 1.442695
  %v399 = vpow.pop %v398
  %v400 = vmul.f32 %v382, 1.442695
  %v401 = vpow.pop %v400
  %v402 = vmul.f32 %v383, 1.442695
  %v403 = vpow.pop %v402
  %v404 = vmul.f32 %v384, 1.442695
  %v405 = vpow.pop %v404
  %v406 = vmul.f32 %v385, 1.442695
  %v407 = vpow.pop %v406
  %v408 = vmul.f32 %v386, 1.442695
  %v409 = vpow.pop %v408
  %v410 = vmul.f32 %v387, 1.442695
  %v411 = vpow.pop %v410
  %v412 = vmul.f32 %v388, 1.442695
  %v413 = vpow.pop %v412
  %v414 = vmul.f32 %v389, 1.442695
  %v415 = vpow.pop %v414
  %v416 = vmul.f32 %v390, 1.442695
  %v417 = vpow.pop %v416
  %v418 = vmul.f32 %v391, 1.442695
  %v419 = vpow.pop %v418
  %v420 = vmul.f32 %v392, 1.442695
  %v421 = vpow.pop %v420
  %v422 = vmul.f32 %v393, 1.442695
  %v423 = vpow.pop %v422
  %v424 = vmul.f32 %v394, 1.442695
  %v425 = vpow.pop %v424
  %v426 = vmul.f32 %v395, 1.442695
  %v427 = vpow.pop %v426
  %v428 = vadd.f32 %v397, 1.0
  %v429 = vadd.f32 %v399, 1.0
  %v430 = vadd.f32 %v401, 1.0
  %v431 = vadd.f32 %v403, 1.0
  %v432 = vadd.f32 %v405, 1.0
  %v433 = vadd.f32 %v407, 1.0
  %v434 = vadd.f32 %v409, 1.0
  %v435 = vadd.f32 %v411, 1.0
  %v436 = vadd.f32 %v413, 1.0
  %v437 = vadd.f32 %v415, 1.0
  %v438 = vadd.f32 %v417, 1.0
  %v439 = vadd.f32 %v419, 1.0
  %v440 = vadd.f32 %v421, 1.0
  %v441 = vadd.f32 %v423, 1.0
  %v442 = vadd.f32 %v425, 1.0
  %v443 = vadd.f32 %v427, 1.0
  %v444 = vrcp.pop %v428
  %v445 = vrcp.pop %v429
  %v446 = vrcp.pop %v430
  %v447 = vrcp.pop %v431
  %v448 = vrcp.pop %v432
  %v449 = vrcp.pop %v433
  %v450 = vrcp.pop %v434
  %v451 = vrcp.pop %v435
  %v452 = vrcp.pop %v436
  %v453 = vrcp.pop %v437
  %v454 = vrcp.pop %v438
  %v455 = vrcp.pop %v439
  %v456 = vrcp.pop %v440
  %v457 = vrcp.pop %v441
  %v458 = vrcp.pop %v442
  %v459 = vrcp.pop %v443
  %v460 = vmax.f32 %v364, 0.0
  %v461 = vmax.f32 %v365, 0.0
  %v462 = vmax.f32 %v366, 0.0
  %v463 = vmax.f32 %v367, 0.0
  %v464 = vmax.f32 %v368, 0.0
  %v465 = vmax.f32 %v369, 0.0
  %v466 = vmax.f32 %v370, 0.0
  %v467 = vmax.f32 %v371, 0.0
  %v468 = vmax.f32 %v372, 0.0
  %v469 = vmax.f32 %v373, 0.0
  %v470 = vmax.f32 %v374, 0.0
  %v471 = vmax.f32 %v375, 0.0
  %v472 = vmax.f32 %v376, 0.0
  %v473 = vmax.f32 %v377, 0.0
  %v474 = vmax.f32 %v378, 0.0
  %v475 = vmax.f32 %v379, 0.0
  %v476 = vand.u32 2147483647, %v364
  %v477 = vand.u32 2147483647, %v365
  %v478 = vand.u32 2147483647, %v366
  %v479 = vand.u32 2147483647, %v367
  %v480 = vand.u32 2147483647, %v368
  %v481 = vand.u32 2147483647, %v369
  %v482 = vand.u32 2147483647, %v370
  %v483 = vand.u32 2147483647, %v371
  %v484 = vand.u32 2147483647, %v372
  %v485 = vand.u32 2147483647, %v373
  %v486 = vand.u32 2147483647, %v374
  %v487 = vand.u32 2147483647, %v375
  %v488 = vand.u32 2147483647, %v376
  %v489 = vand.u32 2147483647, %v377
  %v490 = vand.u32 2147483647, %v378
  %v491 = vand.u32 2147483647, %v379
  %v492 = vsub.f32 0.0, %v476
  %v493 = vsub.f32 0.0, %v477
  %v494 = vsub.f32 0.0, %v478
  %v495 = vsub.f32 0.0, %v479
  %v496 = vsub.f32 0.0, %v480
  %v497 = vsub.f32 0.0, %v481
  %v498 = vsub.f32 0.0, %v482
  %v499 = vsub.f32 0.0, %v483
  %v500 = vsub.f32 0.0, %v484
  %v501 = vsub.f32 0.0, %v485
  %v502 = vsub.f32 0.0, %v486
  %v503 = vsub.f32 0.0, %v487
  %v504 = vsub.f32 0.0, %v488
  %v505 = vsub.f32 0.0, %v489
  %v506 = vsub.f32 0.0, %v490
  %v507 = vsub.f32 0.0, %v491
  %v508 = vmul.f32 %v492, 1.442695
  %v509 = vpow.pop %v508
  %v510 = vmul.f32 %v493, 1.442695
  %v511 = vpow.pop %v510
  %v512 = vmul.f32 %v494, 1.442695
  %v513 = vpow.pop %v512
  %v514 = vmul.f32 %v495, 1.442695
  %v515 = vpow.pop %v514
  %v516 = vmul.f32 %v496, 1.442695
  %v517 = vpow.pop %v516
  %v518 = vmul.f32 %v497, 1.442695
  %v519 = vpow.pop %v518
  %v520 = vmul.f32 %v498, 1.442695
  %v521 = vpow.pop %v520
  %v522 = vmul.f32 %v499, 1.442695
  %v523 = vpow.pop %v522
  %v524 = vmul.f32 %v500, 1.442695
  %v525 = vpow.pop %v524
  %v526 = vmul.f32 %v501, 1.442695
  %v527 = vpow.pop %v526
  %v528 = vmul.f32 %v502, 1.442695
  %v529 = vpow.pop %v528
  %v530 = vmul.f32 %v503, 1.442695
  %v531 = vpow.pop %v530
  %v532 = vmul.f32 %v504, 1.442695
  %v533 = vpow.pop %v532
  %v534 = vmul.f32 %v505, 1.442695
  %v535 = vpow.pop %v534
  %v536 = vmul.f32 %v506, 1.442695
  %v537 = vpow.pop %v536
  %v538 = vmul.f32 %v507, 1.442695
  %v539 = vpow.pop %v538
  %v540 = vadd.f32 %v509, 1.0
  %v541 = vlog2.pop %v540
  %v542 = vmul.f32 %v541, 0.6931472
  %v543 = vmul.f32 -0.5, %v509
  %v544 = vadd.f32 %v543, 1.0
  %v545 = vmul.f32 %v544, %v509
  %v546 = vand.u32 2147483647, %v509
  %vm547 = vcmp.lt.f32.partialorder %v546, 0.0004427343
  %v548 = vsel %vm547, %v545, %v542
  %v549 = vadd.f32 %v511, 1.0
  %v550 = vlog2.pop %v549
  %v551 = vmul.f32 %v550, 0.6931472
  %v552 = vmul.f32 -0.5, %v511
  %v553 = vadd.f32 %v552, 1.0
  %v554 = vmul.f32 %v553, %v511
  %v555 = vand.u32 2147483647, %v511
  %vm556 = vcmp.lt.f32.partialorder %v555, 0.0004427343
  %v557 = vsel %vm556, %v554, %v551
  %v558 = vadd.f32 %v513, 1.0
  %v559 = vlog2.pop %v558
  %v560 = vmul.f32 %v559, 0.6931472
  %v561 = vmul.f32 -0.5, %v513
  %v562 = vadd.f32 %v561, 1.0
  %v563 = vmul.f32 %v562, %v513
  %v564 = vand.u32 2147483647, %v513
  %vm565 = vcmp.lt.f32.partialorder %v564, 0.0004427343
  %v566 = vsel %vm565, %v563, %v560
  %v567 = vadd.f32 %v515, 1.0
  %v568 = vlog2.pop %v567
  %v569 = vmul.f32 %v568, 0.6931472
  %v570 = vmul.f32 -0.5, %v515
  %v571 = vadd.f32 %v570, 1.0
  %v572 = vmul.f32 %v571, %v515
  %v573 = vand.u32 2147483647, %v515
  %vm574 = vcmp.lt.f32.partialorder %v573, 0.0004427343
  %v575 = vsel %vm574, %v572, %v569
  %v576 = vadd.f32 %v517, 1.0
  %v577 = vlog2.pop %v576
  %v578 = vmul.f32 %v577, 0.6931472
  %v579 = vmul.f32 -0.5, %v517
  %v580 = vadd.f32 %v579, 1.0
  %v581 = vmul.f32 %v580, %v517
  %v582 = vand.u32 2147483647, %v517
  %vm583 = vcmp.lt.f32.partialorder %v582, 0.0004427343
  %v584 = vsel %vm583, %v581, %v578
  %v585 = vadd.f32 %v519, 1.0
  %v586 = vlog2.pop %v585
  %v587 = vmul.f32 %v586, 0.6931472
  %v588 = vmul.f32 -0.5, %v519
  %v589 = vadd.f32 %v588, 1.0
  %v590 = vmul.f32 %v589, %v519
  %v591 = vand.u32 2147483647, %v519
  %vm592 = vcmp.lt.f32.partialorder %v591, 0.0004427343
  %v593 = vsel %vm592, %v590, %v587
  %v594 = vadd.f32 %v521, 1.0
  %v595 = vlog2.pop %v594
  %v596 = vmul.f32 %v595, 0.6931472
  %v597 = vmul.f32 -0.5, %v521
  %v598 = vadd.f32 %v597, 1.0
  %v599 = vmul.f32 %v598, %v521
  %v600 = vand.u32 2147483647, %v521
  %vm601 = vcmp.lt.f32.partialorder %v600, 0.0004427343
  %v602 = vsel %vm601, %v599, %v596
  %v603 = vadd.f32 %v523, 1.0
  %v604 = vlog2.pop %v603
  %v605 = vmul.f32 %v604, 0.6931472
  %v606 = vmul.f32 -0.5, %v523
  %v607 = vadd.f32 %v606, 1.0
  %v608 = vmul.f32 %v607, %v523
  %v609 = vand.u32 2147483647, %v523
  %vm610 = vcmp.lt.f32.partialorder %v609, 0.0004427343
  %v611 = vsel %vm610, %v608, %v605
  %v612 = vadd.f32 %v525, 1.0
  %v613 = vlog2.pop %v612
  %v614 = vmul.f32 %v613, 0.6931472
  %v615 = vmul.f32 -0.5, %v525
  %v616 = vadd.f32 %v615, 1.0
  %v617 = vmul.f32 %v616, %v525
  %v618 = vand.u32 2147483647, %v525
  %vm619 = vcmp.lt.f32.partialorder %v618, 0.0004427343
  %v620 = vsel %vm619, %v617, %v614
  %v621 = vadd.f32 %v527, 1.0
  %v622 = vlog2.pop %v621
  %v623 = vmul.f32 %v622, 0.6931472
  %v624 = vmul.f32 -0.5, %v527
  %v625 = vadd.f32 %v624, 1.0
  %v626 = vmul.f32 %v625, %v527
  %v627 = vand.u32 2147483647, %v527
  %vm628 = vcmp.lt.f32.partialorder %v627, 0.0004427343
  %v629 = vsel %vm628, %v626, %v623
  %v630 = vadd.f32 %v529, 1.0
  %v631 = vlog2.pop %v630
  %v632 = vmul.f32 %v631, 0.6931472
  %v633 = vmul.f32 -0.5, %v529
  %v634 = vadd.f32 %v633, 1.0
  %v635 = vmul.f32 %v634, %v529
  %v636 = vand.u32 2147483647, %v529
  %vm637 = vcmp.lt.f32.partialorder %v636, 0.0004427343
  %v638 = vsel %vm637, %v635, %v632
  %v639 = vadd.f32 %v531, 1.0
  %v640 = vlog2.pop %v639
  %v641 = vmul.f32 %v640, 0.6931472
  %v642 = vmul.f32 -0.5, %v531
  %v643 = vadd.f32 %v642, 1.0
  %v644 = vmul.f32 %v643, %v531
  %v645 = vand.u32 2147483647, %v531
  %vm646 = vcmp.lt.f32.partialorder %v645, 0.0004427343
  %v647 = vsel %vm646, %v644, %v641
  %v648 = vadd.f32 %v533, 1.0
  %v649 = vlog2.pop %v648
  %v650 = vmul.f32 %v649, 0.6931472
  %v651 = vmul.f32 -0.5, %v533
  %v652 = vadd.f32 %v651, 1.0
  %v653 = vmul.f32 %v652, %v533
  %v654 = vand.u32 2147483647, %v533
  %vm655 = vcmp.lt.f32.partialorder %v654, 0.0004427343
  %v656 = vsel %vm655, %v653, %v650
  %v657 = vadd.f32 %v535, 1.0
  %v658 = vlog2.pop %v657
  %v659 = vmul.f32 %v658, 0.6931472
  %v660 = vmul.f32 -0.5, %v535
  %v661 = vadd.f32 %v660, 1.0
  %v662 = vmul.f32 %v661, %v535
  %v663 = vand.u32 2147483647, %v535
  %vm664 = vcmp.lt.f32.partialorder %v663, 0.0004427343
  %v665 = vsel %vm664, %v662, %v659
  %v666 = vadd.f32 %v537, 1.0
  %v667 = vlog2.pop %v666
  %v668 = vmul.f32 %v667, 0.6931472
  %v669 = vmul.f32 -0.5, %v537
  %v670 = vadd.f32 %v669, 1.0
  %v671 = vmul.f32 %v670, %v537
  %v672 = vand.u32 2147483647, %v537
  %vm673 = vcmp.lt.f32.partialorder %v672, 0.0004427343
  %v674 = vsel %vm673, %v671, %v668
  %v675 = vadd.f32 %v539, 1.0
  %v676 = vlog2.pop %v675
  %v677 = vmul.f32 %v676, 0.6931472
  %v678 = vmul.f32 -0.5, %v539
  %v679 = vadd.f32 %v678, 1.0
  %v680 = vmul.f32 %v679, %v539
  %v681 = vand.u32 2147483647, %v539
  %vm682 = vcmp.lt.f32.partialorder %v681, 0.0004427343
  %v683 = vsel %vm682, %v680, %v677
  %v684 = vadd.f32 %v460, %v548
  %v685 = vadd.f32 %v461, %v557
  %v686 = vadd.f32 %v462, %v566
  %v687 = vadd.f32 %v463, %v575
  %v688 = vadd.f32 %v464, %v584
  %v689 = vadd.f32 %v465, %v593
  %v690 = vadd.f32 %v466, %v602
  %v691 = vadd.f32 %v467, %v611
  %v692 = vadd.f32 %v468, %v620
  %v693 = vadd.f32 %v469, %v629
  %v694 = vadd.f32 %v470, %v638
  %v695 = vadd.f32 %v471, %v647
  %v696 = vadd.f32 %v472, %v656
  %v697 = vadd.f32 %v473, %v665
  %v698 = vadd.f32 %v474, %v674
  %v699 = vadd.f32 %v475, %v683
  %716 = vrot.lane.b32.xlu0 %v684, 64
  %v717 = vpop.permute.xlu0 %716
  %718 = vrot.lane.b32.xlu0 %v685, 64
  %v719 = vpop.permute.xlu0 %718
  %720 = vrot.lane.b32.xlu0 %v686, 64
  %v721 = vpop.permute.xlu0 %720
  %722 = vrot.lane.b32.xlu0 %v687, 64
  %v723 = vpop.permute.xlu0 %722
  %724 = vrot.lane.b32.xlu0 %v688, 64
  %v725 = vpop.permute.xlu0 %724
  %726 = vrot.lane.b32.xlu0 %v689, 64
  %v727 = vpop.permute.xlu0 %726
  %728 = vrot.lane.b32.xlu0 %v690, 64
  %v729 = vpop.permute.xlu0 %728
  %730 = vrot.lane.b32.xlu0 %v691, 64
  %v731 = vpop.permute.xlu0 %730
  %732 = vrot.lane.b32.xlu0 %v692, 64
  %v733 = vpop.permute.xlu0 %732
  %734 = vrot.lane.b32.xlu0 %v693, 64
  %v735 = vpop.permute.xlu0 %734
  %736 = vrot.lane.b32.xlu0 %v694, 64
  %v737 = vpop.permute.xlu0 %736
  %738 = vrot.lane.b32.xlu0 %v695, 64
  %v739 = vpop.permute.xlu0 %738
  %740 = vrot.lane.b32.xlu0 %v696, 64
  %v741 = vpop.permute.xlu0 %740
  %742 = vrot.lane.b32.xlu0 %v697, 64
  %v743 = vpop.permute.xlu0 %742
  %744 = vrot.lane.b32.xlu0 %v698, 64
  %v745 = vpop.permute.xlu0 %744
  %746 = vrot.lane.b32.xlu0 %v699, 64
  %v747 = vpop.permute.xlu0 %746
  %v764 = vmul.f32 %v444, %v717
  %v765 = vmul.f32 %v445, %v719
  %v766 = vmul.f32 %v446, %v721
  %v767 = vmul.f32 %v447, %v723
  %v768 = vmul.f32 %v448, %v725
  %v769 = vmul.f32 %v449, %v727
  %v770 = vmul.f32 %v450, %v729
  %v771 = vmul.f32 %v451, %v731
  %v772 = vmul.f32 %v452, %v733
  %v773 = vmul.f32 %v453, %v735
  %v774 = vmul.f32 %v454, %v737
  %v775 = vmul.f32 %v455, %v739
  %v776 = vmul.f32 %v456, %v741
  %v777 = vmul.f32 %v457, %v743
  %v778 = vmul.f32 %v458, %v745
  %v779 = vmul.f32 %v459, %v747
  %v780 = vpack.c.bf16 %v765, %v764
  %v781 = vpack.c.bf16 %v767, %v766
  %v782 = vpack.c.bf16 %v769, %v768
  %v783 = vpack.c.bf16 %v771, %v770
  %v784 = vpack.c.bf16 %v773, %v772
  %v785 = vpack.c.bf16 %v775, %v774
  %v786 = vpack.c.bf16 %v777, %v776
  %v787 = vpack.c.bf16 %v779, %v778
  %v788 = vld [vmem:[#allocation2] sm:$0xff]
  %v789 = vld [vmem:[#allocation2 + $0x8] sm:$0xff]
  %v790 = vld [vmem:[#allocation2 + $0x10] sm:$0xff]
  %v791 = vld [vmem:[#allocation2 + $0x18] sm:$0xff]
  %v792 = vld [vmem:[%s6] sm:$0xf]
  %v793 = vld [vmem:[%s6 + $0x4] sm:$0xf]
  %v794 = vld [vmem:[%s6 + $0x8] sm:$0xf]
  %v795 = vld [vmem:[%s6 + $0xc] sm:$0xf]
  %v800 = vunpack.c.l.b16 %v792
  %v801 = vunpack.c.l.b16 %v793
  %v802 = vunpack.c.l.b16 %v794
  %v803 = vunpack.c.l.b16 %v795
  %v804 = vpack.c.b16 %v801, %v800
  %v805 = vpack.c.b16 %v803, %v802
  %808 = vmatprep.subr.bf16.mxu0 0
  %809 = vmatpush1.bf16.msra.mxu0 %v787
  %810 = vmatprep.subr.bf16.mxu0 0
  %811 = vmatpush1.bf16.msra.mxu0 %v786
  %812 = vmatprep.subr.bf16.mxu0 0
  %813 = vmatpush1.bf16.msra.mxu0 %v785
  %814 = vmatprep.subr.bf16.mxu0 0
  %815 = vmatpush1.bf16.msra.mxu0 %v784
  %816 = vmatprep.subr.bf16.mxu0 0
  %817 = vmatpush1.bf16.msra.mxu0 %v783
  %818 = vmatprep.subr.bf16.mxu0 0
  %819 = vmatpush1.bf16.msra.mxu0 %v782
  %820 = vmatprep.subr.bf16.mxu0 0
  %821 = vmatpush1.bf16.msra.mxu0 %v781
  %822 = vmatprep.subr.bf16.mxu0 0
  %823 = vmatpush1.bf16.msra.mxu0 %v780
  %824 = vmatprep.subr.bf16.mxu0 0
  %825 = vmatpush2.bf16.msra.mxu0 0
  %826 = vmatprep.subr.bf16.mxu0 0
  %827 = vmatpush2.bf16.msra.mxu0 0
  %828 = vmatprep.subr.bf16.mxu0 0
  %829 = vmatpush2.bf16.msra.mxu0 0
  %830 = vmatprep.subr.bf16.mxu0 0
  %831 = vmatpush2.bf16.msra.mxu0 0
  %832 = vmatprep.subr.bf16.mxu0 0
  %833 = vmatpush2.bf16.msra.mxu0 0
  %834 = vmatprep.subr.bf16.mxu0 0
  %835 = vmatpush2.bf16.msra.mxu0 0
  %836 = vmatprep.subr.bf16.mxu0 0
  %837 = vmatpush2.bf16.msra.mxu0 0
  %838 = vmatprep.subr.bf16.mxu0 0
  %839 = vmatpush2.bf16.msra.mxu0 0
  %840 = vmatprep.mubr.bf16.mxu0 0
  %841 = vmatmul.mubr.bf16.gmra.mxu0 %v804
  %v842 = vpop.f32.mrf.mxu0
  %v843 = vadd.f32 0.0, %v842
  %v844 = vpop.f32.mrf.mxu0
  %v845 = vpop.f32.mrf.mxu0
  %v846 = vadd.f32 0.0, %v845
  %v847 = vpop.f32.mrf.mxu0
  %848 = vmatprep.mubr.bf16.mxu0 0
  %849 = vmatmul.mubr.bf16.gmra.mxu0 %v805
  %v850 = vpop.f32.mrf.mxu0
  %v851 = vadd.f32 0.0, %v850
  %v852 = vpop.f32.mrf.mxu0
  %v853 = vpop.f32.mrf.mxu0
  %v854 = vadd.f32 0.0, %v853
  %v855 = vpop.f32.mrf.mxu0
  %856 = vdwg.mxu0
  %v857 = vadd.f32 %v788, %v843
  %v858 = vadd.f32 %v789, %v846
  %v859 = vadd.f32 %v790, %v851
  %v860 = vadd.f32 %v791, %v854
  %vm861 = vcmask 523264
  %862 = vst.msk [vmem:[#allocation2] sm:$0xff] %vm861, %v857
  %863 = vst.msk [vmem:[#allocation2 + $0x8] sm:$0xff] %vm861, %v858
  %864 = vst.msk [vmem:[#allocation2 + $0x10] sm:$0xff] %vm861, %v859
  %865 = vst.msk [vmem:[#allocation2 + $0x18] sm:$0xff] %vm861, %v860
  // Predicated region
  $region46: #{cgcnn_forward.18} parent=0 // pred_check
    %p866 = pneg %p36
  $region47: #{cgcnn_forward.18} parent=0 // pred_check_branch
    %868 = sbr.rel (%p866) target = $region49
  $region48: #{cgcnn_forward.18} parent=0 // pred_region
    %v869 = vld [vmem:[#allocation2] sm:$0xff]
    %v870 = vld [vmem:[#allocation2 + $0x8] sm:$0xff]
    %v871 = vld [vmem:[#allocation2 + $0x10] sm:$0xff]
    %v872 = vld [vmem:[#allocation2 + $0x18] sm:$0xff]
    %v873 = vsel %vm861, %v869, 0.0
    %874 = vadd.xlane.f32.xlu0 %v873
    %v875 = vpop.xlane.xlu0 %874
    %v876 = vsel %vm861, %v870, 0.0
    %877 = vadd.xlane.f32.xlu0 %v876
    %v878 = vpop.xlane.xlu0 %877
    %v879 = vsel %vm861, %v871, 0.0
    %880 = vadd.xlane.f32.xlu0 %v879
    %v881 = vpop.xlane.xlu0 %880
    %v882 = vsel %vm861, %v872, 0.0
    %883 = vadd.xlane.f32.xlu0 %v882
    %v884 = vpop.xlane.xlu0 %883
    %v885 = vrcp.pop 64.0
    %v886 = vmul.f32 %v875, %v885
    %v887 = vmul.f32 %v878, %v885
    %v888 = vmul.f32 %v881, %v885
    %v889 = vmul.f32 %v884, %v885
    %v890 = vsub.f32 %v869, %v886
    %v891 = vsub.f32 %v870, %v887
    %v892 = vsub.f32 %v871, %v888
    %v893 = vsub.f32 %v872, %v889
    %v894 = vmul.f32 %v890, %v890
    %v895 = vmul.f32 %v891, %v891
    %v896 = vmul.f32 %v892, %v892
    %v897 = vmul.f32 %v893, %v893
    %v898 = vsel %vm861, %v894, 0.0
    %899 = vadd.xlane.f32.xlu0 %v898
    %v900 = vpop.xlane.xlu0 %899
    %v901 = vsel %vm861, %v895, 0.0
    %902 = vadd.xlane.f32.xlu0 %v901
    %v903 = vpop.xlane.xlu0 %902
    %v904 = vsel %vm861, %v896, 0.0
    %905 = vadd.xlane.f32.xlu0 %v904
    %v906 = vpop.xlane.xlu0 %905
    %v907 = vsel %vm861, %v897, 0.0
    %908 = vadd.xlane.f32.xlu0 %v907
    %v909 = vpop.xlane.xlu0 %908
    %v910 = vmul.f32 %v900, %v885
    %v911 = vmul.f32 %v903, %v885
    %v912 = vmul.f32 %v906, %v885
    %v913 = vmul.f32 %v909, %v885
    %v914 = vadd.f32 %v910, 1e-05
    %v915 = vadd.f32 %v911, 1e-05
    %v916 = vadd.f32 %v912, 1e-05
    %v917 = vadd.f32 %v913, 1e-05
    %v918 = vrsqrt.pop %v914
    %v919 = vrsqrt.pop %v915
    %v920 = vrsqrt.pop %v916
    %v921 = vrsqrt.pop %v917
    %v922 = vmul.f32 %v890, %v918
    %v923 = vmul.f32 %v891, %v919
    %v924 = vmul.f32 %v892, %v920
    %v925 = vmul.f32 %v893, %v921
    %v926 = vld [vmem:[%s8] sm:$0x1]
    %v928 = vlaneseq
    %v929 = vshrl.u32 %v928, 7
    %v930 = vsub.s32 0, %v929
    %v931 = vrot.slane %v926, %v930
    %v933 = vmul.f32 %v922, %v931
    %v934 = vmul.f32 %v923, %v931
    %v935 = vmul.f32 %v924, %v931
    %v936 = vmul.f32 %v925, %v931
    %v937 = vld [vmem:[%s9] sm:$0x1]
    %v939 = vlaneseq
    %v940 = vshrl.u32 %v939, 7
    %v941 = vsub.s32 0, %v940
    %v942 = vrot.slane %v937, %v941
    %v944 = vadd.f32 %v933, %v942
    %v945 = vadd.f32 %v934, %v942
    %v946 = vadd.f32 %v935, %v942
    %v947 = vadd.f32 %v936, %v942
    %v948 = vld [vmem:[%s7] sm:$0xff]
    %v949 = vld [vmem:[%s7 + $0x8] sm:$0xff]
    %v950 = vld [vmem:[%s7 + $0x10] sm:$0xff]
    %v951 = vld [vmem:[%s7 + $0x18] sm:$0xff]
    %v952 = vadd.f32 %v944, %v948
    %v953 = vadd.f32 %v945, %v949
    %v954 = vadd.f32 %v946, %v950
    %v955 = vadd.f32 %v947, %v951
    %v956 = vmax.f32 %v952, 0.0
    %v957 = vmax.f32 %v953, 0.0
    %v958 = vmax.f32 %v954, 0.0
    %v959 = vmax.f32 %v955, 0.0
    %v960 = vand.u32 2147483647, %v952
    %v961 = vand.u32 2147483647, %v953
    %v962 = vand.u32 2147483647, %v954
    %v963 = vand.u32 2147483647, %v955
    %v964 = vsub.f32 0.0, %v960
    %v965 = vsub.f32 0.0, %v961
    %v966 = vsub.f32 0.0, %v962
    %v967 = vsub.f32 0.0, %v963
    %v968 = vmul.f32 %v964, 1.442695
    %v969 = vpow.pop %v968
    %v970 = vmul.f32 %v965, 1.442695
    %v971 = vpow.pop %v970
    %v972 = vmul.f32 %v966, 1.442695
    %v973 = vpow.pop %v972
    %v974 = vmul.f32 %v967, 1.442695
    %v975 = vpow.pop %v974
    %v976 = vadd.f32 %v969, 1.0
    %v977 = vlog2.pop %v976
    %v978 = vmul.f32 %v977, 0.6931472
    %v979 = vmul.f32 -0.5, %v969
    %v980 = vadd.f32 %v979, 1.0
    %v981 = vmul.f32 %v980, %v969
    %v982 = vand.u32 2147483647, %v969
    %vm983 = vcmp.lt.f32.partialorder %v982, 0.0004427343
    %v984 = vsel %vm983, %v981, %v978
    %v985 = vadd.f32 %v971, 1.0
    %v986 = vlog2.pop %v985
    %v987 = vmul.f32 %v986, 0.6931472
    %v988 = vmul.f32 -0.5, %v971
    %v989 = vadd.f32 %v988, 1.0
    %v990 = vmul.f32 %v989, %v971
    %v991 = vand.u32 2147483647, %v971
    %vm992 = vcmp.lt.f32.partialorder %v991, 0.0004427343
    %v993 = vsel %vm992, %v990, %v987
    %v994 = vadd.f32 %v973, 1.0
    %v995 = vlog2.pop %v994
    %v996 = vmul.f32 %v995, 0.6931472
    %v997 = vmul.f32 -0.5, %v973
    %v998 = vadd.f32 %v997, 1.0
    %v999 = vmul.f32 %v998, %v973
    %v1000 = vand.u32 2147483647, %v973
    %vm1001 = vcmp.lt.f32.partialorder %v1000, 0.0004427343
    %v1002 = vsel %vm1001, %v999, %v996
    %v1003 = vadd.f32 %v975, 1.0
    %v1004 = vlog2.pop %v1003
    %v1005 = vmul.f32 %v1004, 0.6931472
    %v1006 = vmul.f32 -0.5, %v975
    %v1007 = vadd.f32 %v1006, 1.0
    %v1008 = vmul.f32 %v1007, %v975
    %v1009 = vand.u32 2147483647, %v975
    %vm1010 = vcmp.lt.f32.partialorder %v1009, 0.0004427343
    %v1011 = vsel %vm1010, %v1008, %v1005
    %v1012 = vadd.f32 %v956, %v984
    %v1013 = vadd.f32 %v957, %v993
    %v1014 = vadd.f32 %v958, %v1002
    %v1015 = vadd.f32 %v959, %v1011
    %1016 = vst.msk [vmem:[%s10] sm:$0xff] %vm861, %v1012
    %1017 = vst.msk [vmem:[%s10 + $0x8] sm:$0xff] %vm861, %v1013
    %1018 = vst.msk [vmem:[%s10 + $0x10] sm:$0xff] %vm861, %v1014
    %1019 = vst.msk [vmem:[%s10 + $0x18] sm:$0xff] %vm861, %v1015
  $region49: #{cgcnn_forward.18} parent=0 // pred_fallthru
    _
  // Predicated region
  $region50: #{cgcnn_forward.18} parent=0 // pred_check
    _
  $region51: #{cgcnn_forward.18} parent=0 // pred_check_branch
    %1021 = sbr.rel (0) target = $region53
  $region52: #{cgcnn_forward.18} parent=0 // pred_region
    _
  $region53: #{cgcnn_forward.18} parent=0 // pred_fallthru
    _
  // Predicated region
  $region54: #{cgcnn_forward.18} parent=0 // pred_check
    _
  $region55: #{cgcnn_forward.18} parent=0 // pred_check_branch
    %1023 = sbr.rel (0) target = $region57
  $region56: #{cgcnn_forward.18} parent=0 // pred_region
    _
  $region57: #{cgcnn_forward.18} parent=0 // pred_fallthru
    _

// kernel: cgcnn_forward.29
$region0: #{cgcnn_forward.29}
  #allocation0 [shape = 'u32[]', space=smem, size = 0x4, offset = 0x4, fixed_abs, tag = 'smem constant byte address 0x4 - core index']
  #allocation1 [shape = 'u32[144,128]{1,0:T(1,128)}', space=vmem, size = 0x12000, scoped, tag = 'internal scratch']
  #allocation2 [shape = 'f32[1,1]{1,0:T(1,128)S(1)}', space=vmem, size = 0x200, scoped, tag = 'scoped memory for cgcnn_forward.29']
  %s0 = inlined_call_operand.vmem [shape: f32[2,32], index: 0, kind: input, shape index: {}]
  %s1 = inlined_call_operand.vmem [shape: f32[32,64], index: 1, kind: input, shape index: {}]
  %s2 = inlined_call_operand.vmem [shape: bf16[64,128], index: 2, kind: input, shape index: {}]
  %s3 = inlined_call_operand.vmem [shape: f32[1,128], index: 3, kind: input, shape index: {}]
  %s4 = inlined_call_operand.vmem [shape: bf16[128,128], index: 4, kind: input, shape index: {}]
  %s5 = inlined_call_operand.vmem [shape: f32[1,128], index: 5, kind: input, shape index: {}]
  %s6 = inlined_call_operand.vmem [shape: bf16[128,128], index: 6, kind: input, shape index: {}]
  %s7 = inlined_call_operand.vmem [shape: f32[1,128], index: 7, kind: input, shape index: {}]
  %s8 = inlined_call_operand.vmem [shape: bf16[128,128], index: 8, kind: input, shape index: {}]
  %s9 = inlined_call_operand.vmem [shape: f32[1,128], index: 9, kind: input, shape index: {}]
  %s10 = inlined_call_operand.vmem [shape: bf16[128,1], index: 10, kind: input, shape index: {}]
  %s11 = inlined_call_operand.<no memory space> [shape: f32[1,1], index: 11, kind: input, shape index: {}]
  %s12 = inlined_call_operand.vmem [shape: f32[2,1], index: 12, kind: output, shape index: {}]
  %s13 = sld [smem:[#allocation0]]
  $region58: #{cgcnn_forward.29} parent=0
    _
  %s15 = ssub.s32 1, %s13
  %s16 = scalar_select 0, %s15, %s13
  %v17 = vstv %s11
  %18 = vst [vmem:[#allocation2] sm:$0x1] %v17
  // Predicated region
  $region2: #{cgcnn_forward.29} parent=0 // pred_check
    _
  $region3: #{cgcnn_forward.29} parent=0 // pred_check_branch
    %20 = sbr.rel (0) target = $region5
  $region4: #{cgcnn_forward.29} parent=0 // pred_region
    _
  $region5: #{cgcnn_forward.29} parent=0 // pred_fallthru
    _
  // Predicated region
  $region6: #{cgcnn_forward.29} parent=0 // pred_check
    _
  $region7: #{cgcnn_forward.29} parent=0 // pred_check_branch
    %22 = sbr.rel (0) target = $region9
  $region8: #{cgcnn_forward.29} parent=0 // pred_region
    _
  $region9: #{cgcnn_forward.29} parent=0 // pred_fallthru
    _
  // Predicated region
  $region10: #{cgcnn_forward.29} parent=0 // pred_check
    _
  $region11: #{cgcnn_forward.29} parent=0 // pred_check_branch
    %24 = sbr.rel (0) target = $region13
  $region12: #{cgcnn_forward.29} parent=0 // pred_region
    _
  $region13: #{cgcnn_forward.29} parent=0 // pred_fallthru
    _
  // Predicated region
  $region14: #{cgcnn_forward.29} parent=0 // pred_check
    _
  $region15: #{cgcnn_forward.29} parent=0 // pred_check_branch
    %26 = sbr.rel (0) target = $region17
  $region16: #{cgcnn_forward.29} parent=0 // pred_region
    _
  $region17: #{cgcnn_forward.29} parent=0 // pred_fallthru
    _
  // Predicated region
  $region18: #{cgcnn_forward.29} parent=0 // pred_check
    _
  $region19: #{cgcnn_forward.29} parent=0 // pred_check_branch
    %28 = sbr.rel (0) target = $region21
  $region20: #{cgcnn_forward.29} parent=0 // pred_region
    _
  $region21: #{cgcnn_forward.29} parent=0 // pred_fallthru
    _
  // Predicated region
  $region22: #{cgcnn_forward.29} parent=0 // pred_check
    _
  $region23: #{cgcnn_forward.29} parent=0 // pred_check_branch
    %30 = sbr.rel (0) target = $region25
  $region24: #{cgcnn_forward.29} parent=0 // pred_region
    _
  $region25: #{cgcnn_forward.29} parent=0 // pred_fallthru
    _
  // Predicated region
  $region26: #{cgcnn_forward.29} parent=0 // pred_check
    _
  $region27: #{cgcnn_forward.29} parent=0 // pred_check_branch
    %32 = sbr.rel (0) target = $region29
  $region28: #{cgcnn_forward.29} parent=0 // pred_region
    _
  $region29: #{cgcnn_forward.29} parent=0 // pred_fallthru
    _
  // Predicated region
  $region30: #{cgcnn_forward.29} parent=0 // pred_check
    _
  $region31: #{cgcnn_forward.29} parent=0 // pred_check_branch
    %34 = sbr.rel (0) target = $region33
  $region32: #{cgcnn_forward.29} parent=0 // pred_region
    _
  $region33: #{cgcnn_forward.29} parent=0 // pred_fallthru
    _
  // Predicated region
  $region34: #{cgcnn_forward.29} parent=0 // pred_check
    _
  $region35: #{cgcnn_forward.29} parent=0 // pred_check_branch
    %36 = sbr.rel (0) target = $region37
  $region36: #{cgcnn_forward.29} parent=0 // pred_region
    _
  $region37: #{cgcnn_forward.29} parent=0 // pred_fallthru
    _
  // Predicated region
  $region38: #{cgcnn_forward.29} parent=0 // pred_check
    _
  $region39: #{cgcnn_forward.29} parent=0 // pred_check_branch
    %38 = sbr.rel (0) target = $region41
  $region40: #{cgcnn_forward.29} parent=0 // pred_region
    _
  $region41: #{cgcnn_forward.29} parent=0 // pred_fallthru
    _
  // Predicated region
  $region42: #{cgcnn_forward.29} parent=0 // pred_check
    _
  $region43: #{cgcnn_forward.29} parent=0 // pred_check_branch
    %40 = sbr.rel (0) target = $region45
  $region44: #{cgcnn_forward.29} parent=0 // pred_region
    _
  $region45: #{cgcnn_forward.29} parent=0 // pred_fallthru
    _
  // Predicated region
  $region46: #{cgcnn_forward.29} parent=0 // pred_check
    _
  $region47: #{cgcnn_forward.29} parent=0 // pred_check_branch
    %42 = sbr.rel (0) target = $region49
  $region48: #{cgcnn_forward.29} parent=0 // pred_region
    _
  $region49: #{cgcnn_forward.29} parent=0 // pred_fallthru
    _
  %v44 = vld [vmem:[%s0] sm:$0x3]
  %v45 = vld [vmem:[%s1] sm:$0xff]
  %v46 = vld [vmem:[%s1 + $0x8] sm:$0xff]
  %v47 = vld [vmem:[%s1 + $0x10] sm:$0xff]
  %v48 = vld [vmem:[%s1 + $0x18] sm:$0xff]
  %vm49 = vcmask 261120
  %v51 = vsel %vm49, %v44, 0
  %53 = vmatprep.subr.mxu0 0.0
  %54 = vmatpush1.msra.mxu0 0.0
  %55 = vmatprep.subr.mxu0 0.0
  %56 = vmatpush1.msra.mxu0 0.0
  %57 = vmatprep.subr.mxu0 0.0
  %58 = vmatpush1.msra.mxu0 0.0
  %59 = vmatprep.subr.mxu0 0.0
  %60 = vmatpush1.msra.mxu0 0.0
  %61 = vmatprep.subr.mxu0 0.0
  %62 = vmatpush1.msra.mxu0 0.0
  %63 = vmatprep.subr.mxu0 0.0
  %64 = vmatpush1.msra.mxu0 0.0
  %65 = vmatprep.subr.mxu0 0.0
  %66 = vmatpush1.msra.mxu0 0.0
  %67 = vmatprep.subr.mxu0 0.0
  %68 = vmatpush1.msra.mxu0 0.0
  %69 = vmatprep.subr.mxu0 0.0
  %70 = vmatpush1.msra.mxu0 0.0
  %71 = vmatprep.subr.mxu0 0.0
  %72 = vmatpush1.msra.mxu0 0.0
  %73 = vmatprep.subr.mxu0 0.0
  %74 = vmatpush1.msra.mxu0 0.0
  %75 = vmatprep.subr.mxu0 0.0
  %76 = vmatpush1.msra.mxu0 0.0
  %77 = vmatprep.subr.mxu0 0.0
  %78 = vmatpush1.msra.mxu0 %v48
  %79 = vmatprep.subr.mxu0 0.0
  %80 = vmatpush1.msra.mxu0 %v47
  %81 = vmatprep.subr.mxu0 0.0
  %82 = vmatpush1.msra.mxu0 %v46
  %83 = vmatprep.subr.mxu0 0.0
  %84 = vmatpush1.msra.mxu0 %v45
  %85 = vmatprep.subr.mxu0 0.0
  %86 = vmatpush2.msra.mxu0 0.0
  %87 = vmatprep.subr.mxu0 0.0
  %88 = vmatpush2.msra.mxu0 0.0
  %89 = vmatprep.subr.mxu0 0.0
  %90 = vmatpush2.msra.mxu0 0.0
  %91 = vmatprep.subr.mxu0 0.0
  %92 = vmatpush2.msra.mxu0 0.0
  %93 = vmatprep.subr.mxu0 0.0
  %94 = vmatpush2.msra.mxu0 0.0
  %95 = vmatprep.subr.mxu0 0.0
  %96 = vmatpush2.msra.mxu0 0.0
  %97 = vmatprep.subr.mxu0 0.0
  %98 = vmatpush2.msra.mxu0 0.0
  %99 = vmatprep.subr.mxu0 0.0
  %100 = vmatpush2.msra.mxu0 0.0
  %101 = vmatprep.subr.mxu0 0.0
  %102 = vmatpush2.msra.mxu0 0.0
  %103 = vmatprep.subr.mxu0 0.0
  %104 = vmatpush2.msra.mxu0 0.0
  %105 = vmatprep.subr.mxu0 0.0
  %106 = vmatpush2.msra.mxu0 0.0
  %107 = vmatprep.subr.mxu0 0.0
  %108 = vmatpush2.msra.mxu0 0.0
  %109 = vmatprep.subr.mxu0 0.0
  %110 = vmatpush2.msra.mxu0 0.0
  %111 = vmatprep.subr.mxu0 0.0
  %112 = vmatpush2.msra.mxu0 0.0
  %113 = vmatprep.subr.mxu0 0.0
  %114 = vmatpush2.msra.mxu0 0.0
  %115 = vmatprep.subr.mxu0 0.0
  %116 = vmatpush2.msra.mxu0 0.0
  %117 = vmatprep.mubr.f32.mxu0 0.0
  %118 = vmatmul.mubr.f32.gmra.mxu0 %v51
  %v119 = vpop.f32.mrf.mxu0
  %v120 = vadd.f32 0.0, %v119
  %v121 = vpop.f32.mrf.mxu0
  %122 = vdwg.mxu0
  %v123 = vld [vmem:[%s2] sm:$0xf]
  %v124 = vld [vmem:[%s2 + $0x4] sm:$0xf]
  %v125 = vld [vmem:[%s2 + $0x8] sm:$0xf]
  %v126 = vld [vmem:[%s2 + $0xc] sm:$0xf]
  %v127 = vld [vmem:[%s2 + $0x10] sm:$0xf]
  %v128 = vld [vmem:[%s2 + $0x14] sm:$0xf]
  %v129 = vld [vmem:[%s2 + $0x18] sm:$0xf]
  %v130 = vld [vmem:[%s2 + $0x1c] sm:$0xf]
  %v131 = vld [vmem:[%s3] sm:$0x1]
  %v132 = vpack.c.bf16 %v120, %v120
  %v134 = vlaneseq
  %v135 = vshrl.u32 %v134, 7
  %v136 = vsub.s32 0, %v135
  %v137 = vrot.slane %v131, %v136
  %v147 = vunpack.c.l.b16 %v123
  %v148 = vunpack.c.l.b16 %v124
  %v149 = vunpack.c.l.b16 %v125
  %v150 = vunpack.c.l.b16 %v126
  %v151 = vunpack.c.l.b16 %v127
  %v152 = vunpack.c.l.b16 %v128
  %v153 = vunpack.c.l.b16 %v129
  %v154 = vunpack.c.l.b16 %v130
  %v155 = vpack.c.b16 %v148, %v147
  %v156 = vpack.c.b16 %v150, %v149
  %v157 = vpack.c.b16 %v152, %v151
  %v158 = vpack.c.b16 %v154, %v153
  %vm163 = vcmask 523264
  %v165 = vsel %vm163, %v132, 0
  %167 = vmatprep.subr.bf16.mxu0 0
  %168 = vmatpush1.bf16.msra.mxu0 0
  %169 = vmatprep.subr.bf16.mxu0 0
  %170 = vmatpush1.bf16.msra.mxu0 0
  %171 = vmatprep.subr.bf16.mxu0 0
  %172 = vmatpush1.bf16.msra.mxu0 0
  %173 = vmatprep.subr.bf16.mxu0 0
  %174 = vmatpush1.bf16.msra.mxu0 0
  %175 = vmatprep.subr.bf16.mxu0 0
  %176 = vmatpush1.bf16.msra.mxu0 %v158
  %177 = vmatprep.subr.bf16.mxu0 0
  %178 = vmatpush1.bf16.msra.mxu0 %v157
  %179 = vmatprep.subr.bf16.mxu0 0
  %180 = vmatpush1.bf16.msra.mxu0 %v156
  %181 = vmatprep.subr.bf16.mxu0 0
  %182 = vmatpush1.bf16.msra.mxu0 %v155
  %183 = vmatprep.subr.bf16.mxu0 0
  %184 = vmatpush2.bf16.msra.mxu0 0
  %185 = vmatprep.subr.bf16.mxu0 0
  %186 = vmatpush2.bf16.msra.mxu0 0
  %187 = vmatprep.subr.bf16.mxu0 0
  %188 = vmatpush2.bf16.msra.mxu0 0
  %189 = vmatprep.subr.bf16.mxu0 0
  %190 = vmatpush2.bf16.msra.mxu0 0
  %191 = vmatprep.subr.bf16.mxu0 0
  %192 = vmatpush2.bf16.msra.mxu0 0
  %193 = vmatprep.subr.bf16.mxu0 0
  %194 = vmatpush2.bf16.msra.mxu0 0
  %195 = vmatprep.subr.bf16.mxu0 0
  %196 = vmatpush2.bf16.msra.mxu0 0
  %197 = vmatprep.subr.bf16.mxu0 0
  %198 = vmatpush2.bf16.msra.mxu0 0
  %199 = vmatprep.mubr.bf16.mxu0 0
  %200 = vmatmul.mubr.bf16.gmra.mxu0 %v165
  %v201 = vpop.f32.mrf.mxu0
  %v202 = vadd.f32 %v137, %v201
  %v203 = vpop.f32.mrf.mxu0
  %v204 = vpop.f32.mrf.mxu0
  %v205 = vpop.f32.mrf.mxu0
  %206 = vdwg.mxu0
  %v207 = vmax.f32 %v202, 0.0
  %v208 = vand.u32 2147483647, %v202
  %v209 = vsub.f32 0.0, %v208
  %v210 = vmul.f32 %v209, 1.442695
  %v211 = vpow.pop %v210
  %v212 = vadd.f32 %v211, 1.0
  %v213 = vlog2.pop %v212
  %v214 = vmul.f32 %v213, 0.6931472
  %v215 = vmul.f32 -0.5, %v211
  %v216 = vadd.f32 %v215, 1.0
  %v217 = vmul.f32 %v216, %v211
  %v218 = vand.u32 2147483647, %v211
  %vm219 = vcmp.lt.f32.partialorder %v218, 0.0004427343
  %v220 = vsel %vm219, %v217, %v214
  %v221 = vadd.f32 %v207, %v220
  %v222 = vld [vmem:[%s4] sm:$0xf]
  %v223 = vld [vmem:[%s4 + $0x4] sm:$0xf]
  %v224 = vld [vmem:[%s4 + $0x8] sm:$0xf]
  %v225 = vld [vmem:[%s4 + $0xc] sm:$0xf]
  %v226 = vld [vmem:[%s4 + $0x10] sm:$0xf]
  %v227 = vld [vmem:[%s4 + $0x14] sm:$0xf]
  %v228 = vld [vmem:[%s4 + $0x18] sm:$0xf]
  %v229 = vld [vmem:[%s4 + $0x1c] sm:$0xf]
  %v230 = vld [vmem:[%s4 + $0x20] sm:$0xf]
  %v231 = vld [vmem:[%s4 + $0x24] sm:$0xf]
  %v232 = vld [vmem:[%s4 + $0x28] sm:$0xf]
  %v233 = vld [vmem:[%s4 + $0x2c] sm:$0xf]
  %v234 = vld [vmem:[%s4 + $0x30] sm:$0xf]
  %v235 = vld [vmem:[%s4 + $0x34] sm:$0xf]
  %v236 = vld [vmem:[%s4 + $0x38] sm:$0xf]
  %v237 = vld [vmem:[%s4 + $0x3c] sm:$0xf]
  %v238 = vld [vmem:[%s5] sm:$0x1]
  %v239 = vpack.c.bf16 %v221, %v221
  %v241 = vlaneseq
  %v242 = vshrl.u32 %v241, 7
  %v243 = vsub.s32 0, %v242
  %v244 = vrot.slane %v238, %v243
  %v262 = vunpack.c.l.b16 %v222
  %v263 = vunpack.c.l.b16 %v223
  %v264 = vunpack.c.l.b16 %v224
  %v265 = vunpack.c.l.b16 %v225
  %v266 = vunpack.c.l.b16 %v226
  %v267 = vunpack.c.l.b16 %v227
  %v268 = vunpack.c.l.b16 %v228
  %v269 = vunpack.c.l.b16 %v229
  %v270 = vunpack.c.l.b16 %v230
  %v271 = vunpack.c.l.b16 %v231
  %v272 = vunpack.c.l.b16 %v232
  %v273 = vunpack.c.l.b16 %v233
  %v274 = vunpack.c.l.b16 %v234
  %v275 = vunpack.c.l.b16 %v235
  %v276 = vunpack.c.l.b16 %v236
  %v277 = vunpack.c.l.b16 %v237
  %v278 = vpack.c.b16 %v263, %v262
  %v279 = vpack.c.b16 %v265, %v264
  %v280 = vpack.c.b16 %v267, %v266
  %v281 = vpack.c.b16 %v269, %v268
  %v282 = vpack.c.b16 %v271, %v270
  %v283 = vpack.c.b16 %v273, %v272
  %v284 = vpack.c.b16 %v275, %v274
  %v285 = vpack.c.b16 %v277, %v276
  %294 = vmatprep.subr.bf16.mxu0 0
  %295 = vmatpush1.bf16.msra.mxu0 %v285
  %296 = vmatprep.subr.bf16.mxu0 0
  %297 = vmatpush1.bf16.msra.mxu0 %v284
  %298 = vmatprep.subr.bf16.mxu0 0
  %299 = vmatpush1.bf16.msra.mxu0 %v283
  %300 = vmatprep.subr.bf16.mxu0 0
  %301 = vmatpush1.bf16.msra.mxu0 %v282
  %302 = vmatprep.subr.bf16.mxu0 0
  %303 = vmatpush1.bf16.msra.mxu0 %v281
  %304 = vmatprep.subr.bf16.mxu0 0
  %305 = vmatpush1.bf16.msra.mxu0 %v280
  %306 = vmatprep.subr.bf16.mxu0 0
  %307 = vmatpush1.bf16.msra.mxu0 %v279
  %308 = vmatprep.subr.bf16.mxu0 0
  %309 = vmatpush1.bf16.msra.mxu0 %v278
  %310 = vmatprep.subr.bf16.mxu0 0
  %311 = vmatpush2.bf16.msra.mxu0 0
  %312 = vmatprep.subr.bf16.mxu0 0
  %313 = vmatpush2.bf16.msra.mxu0 0
  %314 = vmatprep.subr.bf16.mxu0 0
  %315 = vmatpush2.bf16.msra.mxu0 0
  %316 = vmatprep.subr.bf16.mxu0 0
  %317 = vmatpush2.bf16.msra.mxu0 0
  %318 = vmatprep.subr.bf16.mxu0 0
  %319 = vmatpush2.bf16.msra.mxu0 0
  %320 = vmatprep.subr.bf16.mxu0 0
  %321 = vmatpush2.bf16.msra.mxu0 0
  %322 = vmatprep.subr.bf16.mxu0 0
  %323 = vmatpush2.bf16.msra.mxu0 0
  %324 = vmatprep.subr.bf16.mxu0 0
  %325 = vmatpush2.bf16.msra.mxu0 0
  %326 = vmatprep.mubr.bf16.mxu0 0
  %327 = vmatmul.mubr.bf16.gmra.mxu0 %v239
  %v328 = vpop.f32.mrf.mxu0
  %v329 = vadd.f32 %v244, %v328
  %v330 = vpop.f32.mrf.mxu0
  %v331 = vpop.f32.mrf.mxu0
  %v332 = vpop.f32.mrf.mxu0
  %333 = vdwg.mxu0
  %v334 = vmax.f32 %v329, 0.0
  %v335 = vand.u32 2147483647, %v329
  %v336 = vsub.f32 0.0, %v335
  %v337 = vmul.f32 %v336, 1.442695
  %v338 = vpow.pop %v337
  %v339 = vadd.f32 %v338, 1.0
  %v340 = vlog2.pop %v339
  %v341 = vmul.f32 %v340, 0.6931472
  %v342 = vmul.f32 -0.5, %v338
  %v343 = vadd.f32 %v342, 1.0
  %v344 = vmul.f32 %v343, %v338
  %v345 = vand.u32 2147483647, %v338
  %vm346 = vcmp.lt.f32.partialorder %v345, 0.0004427343
  %v347 = vsel %vm346, %v344, %v341
  %v348 = vadd.f32 %v334, %v347
  %v349 = vld [vmem:[%s6] sm:$0xf]
  %v350 = vld [vmem:[%s6 + $0x4] sm:$0xf]
  %v351 = vld [vmem:[%s6 + $0x8] sm:$0xf]
  %v352 = vld [vmem:[%s6 + $0xc] sm:$0xf]
  %v353 = vld [vmem:[%s6 + $0x10] sm:$0xf]
  %v354 = vld [vmem:[%s6 + $0x14] sm:$0xf]
  %v355 = vld [vmem:[%s6 + $0x18] sm:$0xf]
  %v356 = vld [vmem:[%s6 + $0x1c] sm:$0xf]
  %v357 = vld [vmem:[%s6 + $0x20] sm:$0xf]
  %v358 = vld [vmem:[%s6 + $0x24] sm:$0xf]
  %v359 = vld [vmem:[%s6 + $0x28] sm:$0xf]
  %v360 = vld [vmem:[%s6 + $0x2c] sm:$0xf]
  %v361 = vld [vmem:[%s6 + $0x30] sm:$0xf]
  %v362 = vld [vmem:[%s6 + $0x34] sm:$0xf]
  %v363 = vld [vmem:[%s6 + $0x38] sm:$0xf]
  %v364 = vld [vmem:[%s6 + $0x3c] sm:$0xf]
  %v365 = vld [vmem:[%s7] sm:$0x1]
  %v366 = vpack.c.bf16 %v348, %v348
  %v368 = vlaneseq
  %v369 = vshrl.u32 %v368, 7
  %v370 = vsub.s32 0, %v369
  %v371 = vrot.slane %v365, %v370
  %v389 = vunpack.c.l.b16 %v349
  %v390 = vunpack.c.l.b16 %v350
  %v391 = vunpack.c.l.b16 %v351
  %v392 = vunpack.c.l.b16 %v352
  %v393 = vunpack.c.l.b16 %v353
  %v394 = vunpack.c.l.b16 %v354
  %v395 = vunpack.c.l.b16 %v355
  %v396 = vunpack.c.l.b16 %v356
  %v397 = vunpack.c.l.b16 %v357
  %v398 = vunpack.c.l.b16 %v358
  %v399 = vunpack.c.l.b16 %v359
  %v400 = vunpack.c.l.b16 %v360
  %v401 = vunpack.c.l.b16 %v361
  %v402 = vunpack.c.l.b16 %v362
  %v403 = vunpack.c.l.b16 %v363
  %v404 = vunpack.c.l.b16 %v364
  %v405 = vpack.c.b16 %v390, %v389
  %v406 = vpack.c.b16 %v392, %v391
  %v407 = vpack.c.b16 %v394, %v393
  %v408 = vpack.c.b16 %v396, %v395
  %v409 = vpack.c.b16 %v398, %v397
  %v410 = vpack.c.b16 %v400, %v399
  %v411 = vpack.c.b16 %v402, %v401
  %v412 = vpack.c.b16 %v404, %v403
  %421 = vmatprep.subr.bf16.mxu0 0
  %422 = vmatpush1.bf16.msra.mxu0 %v412
  %423 = vmatprep.subr.bf16.mxu0 0
  %424 = vmatpush1.bf16.msra.mxu0 %v411
  %425 = vmatprep.subr.bf16.mxu0 0
  %426 = vmatpush1.bf16.msra.mxu0 %v410
  %427 = vmatprep.subr.bf16.mxu0 0
  %428 = vmatpush1.bf16.msra.mxu0 %v409
  %429 = vmatprep.subr.bf16.mxu0 0
  %430 = vmatpush1.bf16.msra.mxu0 %v408
  %431 = vmatprep.subr.bf16.mxu0 0
  %432 = vmatpush1.bf16.msra.mxu0 %v407
  %433 = vmatprep.subr.bf16.mxu0 0
  %434 = vmatpush1.bf16.msra.mxu0 %v406
  %435 = vmatprep.subr.bf16.mxu0 0
  %436 = vmatpush1.bf16.msra.mxu0 %v405
  %437 = vmatprep.subr.bf16.mxu0 0
  %438 = vmatpush2.bf16.msra.mxu0 0
  %439 = vmatprep.subr.bf16.mxu0 0
  %440 = vmatpush2.bf16.msra.mxu0 0
  %441 = vmatprep.subr.bf16.mxu0 0
  %442 = vmatpush2.bf16.msra.mxu0 0
  %443 = vmatprep.subr.bf16.mxu0 0
  %444 = vmatpush2.bf16.msra.mxu0 0
  %445 = vmatprep.subr.bf16.mxu0 0
  %446 = vmatpush2.bf16.msra.mxu0 0
  %447 = vmatprep.subr.bf16.mxu0 0
  %448 = vmatpush2.bf16.msra.mxu0 0
  %449 = vmatprep.subr.bf16.mxu0 0
  %450 = vmatpush2.bf16.msra.mxu0 0
  %451 = vmatprep.subr.bf16.mxu0 0
  %452 = vmatpush2.bf16.msra.mxu0 0
  %453 = vmatprep.mubr.bf16.mxu0 0
  %454 = vmatmul.mubr.bf16.gmra.mxu0 %v366
  %v455 = vpop.f32.mrf.mxu0
  %v456 = vadd.f32 %v371, %v455
  %v457 = vpop.f32.mrf.mxu0
  %v458 = vpop.f32.mrf.mxu0
  %v459 = vpop.f32.mrf.mxu0
  %460 = vdwg.mxu0
  %v461 = vmax.f32 %v456, 0.0
  %v462 = vand.u32 2147483647, %v456
  %v463 = vsub.f32 0.0, %v462
  %v464 = vmul.f32 %v463, 1.442695
  %v465 = vpow.pop %v464
  %v466 = vadd.f32 %v465, 1.0
  %v467 = vlog2.pop %v466
  %v468 = vmul.f32 %v467, 0.6931472
  %v469 = vmul.f32 -0.5, %v465
  %v470 = vadd.f32 %v469, 1.0
  %v471 = vmul.f32 %v470, %v465
  %v472 = vand.u32 2147483647, %v465
  %vm473 = vcmp.lt.f32.partialorder %v472, 0.0004427343
  %v474 = vsel %vm473, %v471, %v468
  %v475 = vadd.f32 %v461, %v474
  %v476 = vld [vmem:[%s8] sm:$0xf]
  %v477 = vld [vmem:[%s8 + $0x4] sm:$0xf]
  %v478 = vld [vmem:[%s8 + $0x8] sm:$0xf]
  %v479 = vld [vmem:[%s8 + $0xc] sm:$0xf]
  %v480 = vld [vmem:[%s8 + $0x10] sm:$0xf]
  %v481 = vld [vmem:[%s8 + $0x14] sm:$0xf]
  %v482 = vld [vmem:[%s8 + $0x18] sm:$0xf]
  %v483 = vld [vmem:[%s8 + $0x1c] sm:$0xf]
  %v484 = vld [vmem:[%s8 + $0x20] sm:$0xf]
  %v485 = vld [vmem:[%s8 + $0x24] sm:$0xf]
  %v486 = vld [vmem:[%s8 + $0x28] sm:$0xf]
  %v487 = vld [vmem:[%s8 + $0x2c] sm:$0xf]
  %v488 = vld [vmem:[%s8 + $0x30] sm:$0xf]
  %v489 = vld [vmem:[%s8 + $0x34] sm:$0xf]
  %v490 = vld [vmem:[%s8 + $0x38] sm:$0xf]
  %v491 = vld [vmem:[%s8 + $0x3c] sm:$0xf]
  %v492 = vld [vmem:[%s9] sm:$0x1]
  %v493 = vpack.c.bf16 %v475, %v475
  %v495 = vlaneseq
  %v496 = vshrl.u32 %v495, 7
  %v497 = vsub.s32 0, %v496
  %v498 = vrot.slane %v492, %v497
  %v516 = vunpack.c.l.b16 %v476
  %v517 = vunpack.c.l.b16 %v477
  %v518 = vunpack.c.l.b16 %v478
  %v519 = vunpack.c.l.b16 %v479
  %v520 = vunpack.c.l.b16 %v480
  %v521 = vunpack.c.l.b16 %v481
  %v522 = vunpack.c.l.b16 %v482
  %v523 = vunpack.c.l.b16 %v483
  %v524 = vunpack.c.l.b16 %v484
  %v525 = vunpack.c.l.b16 %v485
  %v526 = vunpack.c.l.b16 %v486
  %v527 = vunpack.c.l.b16 %v487
  %v528 = vunpack.c.l.b16 %v488
  %v529 = vunpack.c.l.b16 %v489
  %v530 = vunpack.c.l.b16 %v490
  %v531 = vunpack.c.l.b16 %v491
  %v532 = vpack.c.b16 %v517, %v516
  %v533 = vpack.c.b16 %v519, %v518
  %v534 = vpack.c.b16 %v521, %v520
  %v535 = vpack.c.b16 %v523, %v522
  %v536 = vpack.c.b16 %v525, %v524
  %v537 = vpack.c.b16 %v527, %v526
  %v538 = vpack.c.b16 %v529, %v528
  %v539 = vpack.c.b16 %v531, %v530
  %548 = vmatprep.subr.bf16.mxu0 0
  %549 = vmatpush1.bf16.msra.mxu0 %v539
  %550 = vmatprep.subr.bf16.mxu0 0
  %551 = vmatpush1.bf16.msra.mxu0 %v538
  %552 = vmatprep.subr.bf16.mxu0 0
  %553 = vmatpush1.bf16.msra.mxu0 %v537
  %554 = vmatprep.subr.bf16.mxu0 0
  %555 = vmatpush1.bf16.msra.mxu0 %v536
  %556 = vmatprep.subr.bf16.mxu0 0
  %557 = vmatpush1.bf16.msra.mxu0 %v535
  %558 = vmatprep.subr.bf16.mxu0 0
  %559 = vmatpush1.bf16.msra.mxu0 %v534
  %560 = vmatprep.subr.bf16.mxu0 0
  %561 = vmatpush1.bf16.msra.mxu0 %v533
  %562 = vmatprep.subr.bf16.mxu0 0
  %563 = vmatpush1.bf16.msra.mxu0 %v532
  %564 = vmatprep.subr.bf16.mxu0 0
  %565 = vmatpush2.bf16.msra.mxu0 0
  %566 = vmatprep.subr.bf16.mxu0 0
  %567 = vmatpush2.bf16.msra.mxu0 0
  %568 = vmatprep.subr.bf16.mxu0 0
  %569 = vmatpush2.bf16.msra.mxu0 0
  %570 = vmatprep.subr.bf16.mxu0 0
  %571 = vmatpush2.bf16.msra.mxu0 0
  %572 = vmatprep.subr.bf16.mxu0 0
  %573 = vmatpush2.bf16.msra.mxu0 0
  %574 = vmatprep.subr.bf16.mxu0 0
  %575 = vmatpush2.bf16.msra.mxu0 0
  %576 = vmatprep.subr.bf16.mxu0 0
  %577 = vmatpush2.bf16.msra.mxu0 0
  %578 = vmatprep.subr.bf16.mxu0 0
  %579 = vmatpush2.bf16.msra.mxu0 0
  %580 = vmatprep.mubr.bf16.mxu0 0
  %581 = vmatmul.mubr.bf16.gmra.mxu0 %v493
  %v582 = vpop.f32.mrf.mxu0
  %v583 = vadd.f32 %v498, %v582
  %v584 = vpop.f32.mrf.mxu0
  %v585 = vpop.f32.mrf.mxu0
  %v586 = vpop.f32.mrf.mxu0
  %587 = vdwg.mxu0
  %v588 = vmax.f32 %v583, 0.0
  %v589 = vand.u32 2147483647, %v583
  %v590 = vsub.f32 0.0, %v589
  %v591 = vmul.f32 %v590, 1.442695
  %v592 = vpow.pop %v591
  %v593 = vadd.f32 %v592, 1.0
  %v594 = vlog2.pop %v593
  %v595 = vmul.f32 %v594, 0.6931472
  %v596 = vmul.f32 -0.5, %v592
  %v597 = vadd.f32 %v596, 1.0
  %v598 = vmul.f32 %v597, %v592
  %v599 = vand.u32 2147483647, %v592
  %vm600 = vcmp.lt.f32.partialorder %v599, 0.0004427343
  %v601 = vsel %vm600, %v598, %v595
  %v602 = vadd.f32 %v588, %v601
  %v603 = vld [vmem:[%s10] sm:$0xf]
  %v604 = vld [vmem:[%s10 + $0x4] sm:$0xf]
  %v605 = vld [vmem:[%s10 + $0x8] sm:$0xf]
  %v606 = vld [vmem:[%s10 + $0xc] sm:$0xf]
  %v607 = vld [vmem:[%s10 + $0x10] sm:$0xf]
  %v608 = vld [vmem:[%s10 + $0x14] sm:$0xf]
  %v609 = vld [vmem:[%s10 + $0x18] sm:$0xf]
  %v610 = vld [vmem:[%s10 + $0x1c] sm:$0xf]
  %v611 = vld [vmem:[%s10 + $0x20] sm:$0xf]
  %v612 = vld [vmem:[%s10 + $0x24] sm:$0xf]
  %v613 = vld [vmem:[%s10 + $0x28] sm:$0xf]
  %v614 = vld [vmem:[%s10 + $0x2c] sm:$0xf]
  %v615 = vld [vmem:[%s10 + $0x30] sm:$0xf]
  %v616 = vld [vmem:[%s10 + $0x34] sm:$0xf]
  %v617 = vld [vmem:[%s10 + $0x38] sm:$0xf]
  %v618 = vld [vmem:[%s10 + $0x3c] sm:$0xf]
  %v619 = vld [vmem:[#allocation2] sm:$0x1]
  %v620 = vpack.c.bf16 %v602, %v602
  %v622 = vlaneseq
  %v623 = vshrl.u32 %v622, 7
  %v624 = vsub.s32 0, %v623
  %v625 = vrot.slane %v619, %v624
  %v643 = vunpack.c.l.b16 %v603
  %v644 = vunpack.c.l.b16 %v604
  %v645 = vunpack.c.l.b16 %v605
  %v646 = vunpack.c.l.b16 %v606
  %v647 = vunpack.c.l.b16 %v607
  %v648 = vunpack.c.l.b16 %v608
  %v649 = vunpack.c.l.b16 %v609
  %v650 = vunpack.c.l.b16 %v610
  %v651 = vunpack.c.l.b16 %v611
  %v652 = vunpack.c.l.b16 %v612
  %v653 = vunpack.c.l.b16 %v613
  %v654 = vunpack.c.l.b16 %v614
  %v655 = vunpack.c.l.b16 %v615
  %v656 = vunpack.c.l.b16 %v616
  %v657 = vunpack.c.l.b16 %v617
  %v658 = vunpack.c.l.b16 %v618
  %v659 = vpack.c.b16 %v644, %v643
  %v660 = vpack.c.b16 %v646, %v645
  %v661 = vpack.c.b16 %v648, %v647
  %v662 = vpack.c.b16 %v650, %v649
  %v663 = vpack.c.b16 %v652, %v651
  %v664 = vpack.c.b16 %v654, %v653
  %v665 = vpack.c.b16 %v656, %v655
  %v666 = vpack.c.b16 %v658, %v657
  %675 = vmatprep.subr.bf16.mxu0 0
  %676 = vmatpush1.bf16.msra.mxu0 %v666
  %677 = vmatprep.subr.bf16.mxu0 0
  %678 = vmatpush1.bf16.msra.mxu0 %v665
  %679 = vmatprep.subr.bf16.mxu0 0
  %680 = vmatpush1.bf16.msra.mxu0 %v664
  %681 = vmatprep.subr.bf16.mxu0 0
  %682 = vmatpush1.bf16.msra.mxu0 %v663
  %683 = vmatprep.subr.bf16.mxu0 0
  %684 = vmatpush1.bf16.msra.mxu0 %v662
  %685 = vmatprep.subr.bf16.mxu0 0
  %686 = vmatpush1.bf16.msra.mxu0 %v661
  %687 = vmatprep.subr.bf16.mxu0 0
  %688 = vmatpush1.bf16.msra.mxu0 %v660
  %689 = vmatprep.subr.bf16.mxu0 0
  %690 = vmatpush1.bf16.msra.mxu0 %v659
  %691 = vmatprep.subr.bf16.mxu0 0
  %692 = vmatpush2.bf16.msra.mxu0 0
  %693 = vmatprep.subr.bf16.mxu0 0
  %694 = vmatpush2.bf16.msra.mxu0 0
  %695 = vmatprep.subr.bf16.mxu0 0
  %696 = vmatpush2.bf16.msra.mxu0 0
  %697 = vmatprep.subr.bf16.mxu0 0
  %698 = vmatpush2.bf16.msra.mxu0 0
  %699 = vmatprep.subr.bf16.mxu0 0
  %700 = vmatpush2.bf16.msra.mxu0 0
  %701 = vmatprep.subr.bf16.mxu0 0
  %702 = vmatpush2.bf16.msra.mxu0 0
  %703 = vmatprep.subr.bf16.mxu0 0
  %704 = vmatpush2.bf16.msra.mxu0 0
  %705 = vmatprep.subr.bf16.mxu0 0
  %706 = vmatpush2.bf16.msra.mxu0 0
  %707 = vmatprep.mubr.bf16.mxu0 0
  %708 = vmatmul.mubr.bf16.gmra.mxu0 %v620
  %v709 = vpop.f32.mrf.mxu0
  %v710 = vadd.f32 %v625, %v709
  %v711 = vpop.f32.mrf.mxu0
  %v712 = vpop.f32.mrf.mxu0
  %v713 = vpop.f32.mrf.mxu0
  %714 = vdwg.mxu0
  %vm715 = vcmask 1024
  %716 = vst.msk [vmem:[%s12] sm:$0x3] %vm715, %v710
  // Predicated region
  $region50: #{cgcnn_forward.29} parent=0 // pred_check
    _
  $region51: #{cgcnn_forward.29} parent=0 // pred_check_branch
    %718 = sbr.rel (0) target = $region53
  $region52: #{cgcnn_forward.29} parent=0 // pred_region
    _
  $region53: #{cgcnn_forward.29} parent=0 // pred_fallthru
    _
  // Predicated region
  $region54: #{cgcnn_forward.29} parent=0 // pred_check
    _
  $region55: #{cgcnn_forward.29} parent=0 // pred_check_branch
    %720 = sbr.rel (0) target = $region57
  $region56: #{cgcnn_forward.29} parent=0 // pred_region
    _
  $region57: #{cgcnn_forward.29} parent=0 // pred_fallthru
    _

</llo_original>
